<compile_context>
chip_gen: v7x
topology: tpu7x:2x2x1
jax: 0.10.0
libtpu: 0.0.40
codegen_flags: <defaults>
</compile_context>

<pallas_src>
import jax
import jax.numpy as jnp
from jax.experimental import pallas as pl
from jax.experimental.pallas import tpu as pltpu


def _mixout_linear_kernel(seed_ref, thr_ref, x_ref, w_cur_ref, w_pre_ref,
                          b_ref, o_ref, w_mixed_ref, acc_ref):
    i = pl.program_id(0)          # out_features tile (parallel)
    k = pl.program_id(1)          # in_features tile (reduction, arbitrary)
    tn, tk = w_cur_ref.shape

    seed_u = seed_ref[0].astype(jnp.uint32)

    # ---- grid-invariant Bernoulli(p) mask via a separable integer hash ------
    # Full avalanche only on the 1-D row / column index vectors (cheap: tn + tk
    # elements); per weight element only: add, mul, shift, xor, shift, compare,
    # select.
    row = (jax.lax.broadcasted_iota(jnp.int32, (tn, 1), 0)
           + i * tn).astype(jnp.uint32)                       # global row idx
    col = (jax.lax.broadcasted_iota(jnp.int32, (1, tk), 1)
           + k * tk).astype(jnp.uint32)                       # global col idx

    def _mix32(h):
        h = h ^ (h >> 16)
        h = h * jnp.uint32(0x7FEB352D)
        h = h ^ (h >> 15)
        h = h * jnp.uint32(0x846CA68B)
        h = h ^ (h >> 16)
        return h

    r = _mix32(row * jnp.uint32(0x9E3779B1) + seed_u)                         # (tn, 1)
    c = _mix32(col * jnp.uint32(0x85EBCA77) + (seed_u ^ jnp.uint32(0x6C62272E)))  # (1, tk)

    h = r + c                                   # broadcast -> (tn, tk)
    h = h * jnp.uint32(0x9E3779B1)
    h = h ^ (h >> 16)
    h31 = (h >> 1).astype(jnp.int32)            # uniform in [0, 2^31)
    mask = h31 < thr_ref[0]                     # exact integer compare, P = p

    # ---- weight mixing: one vselect (no float lerp, no dtype converts) ------
    w_mixed = jnp.where(mask, w_pre_ref[...], w_cur_ref[...])
    w_mixed_ref[...] = w_mixed

    # ---- linear layer: accumulate over K tiles, no explicit transpose -------
    @pl.when(k == 0)
    def _():
        acc_ref[...] = jnp.zeros_like(acc_ref)

    start = pl.multiple_of(k * tk, tk)
    x_blk = x_ref[:, pl.ds(start, tk)]          # x is fully resident in VMEM
    acc_ref[...] += jax.lax.dot_general(
        x_blk, w_mixed,
        dimension_numbers=(((1,), (1,)), ((), ())),
        preferred_element_type=jnp.float32)

    @pl.when(k == pl.num_programs(1) - 1)
    def _():
        o_ref[...] = (acc_ref[...] + b_ref[...]).astype(o_ref.dtype)


# Cap a single weight tile at 512K elements (~2 MiB f32): three streams x two
# pipeline buffers stays ~12 MiB, leaving slack on v7x's 64 MiB VMEM.
_W_TILE_ELEM_CAP = 512 * 1024
_PREFERRED_TILES = (1024, 768, 512, 256, 128)


def _pick_tile(dim, *, cap_elems=None, other=1, prefer_even_count=False,
               preferred=_PREFERRED_TILES):
    cands = [t for t in preferred if dim % t == 0]
    if not cands:
        return dim                      # full extent is always a legal block
    if cap_elems is not None:
        capped = [t for t in cands if t * other <= cap_elems]
        cands = capped if capped else [cands[-1]]
    if prefer_even_count:
        for t in cands:
            if (dim // t) % 2 == 0:     # balance the parallel axis on megacore
                return t
    return cands[0]


def mixout_linear(x, w_current, w_pretrained, bias, *, p, seed,
                  training=True, tn=None, tk=None, donate_w_current=False):
    """Pallas Mixout-wrapped linear. Returns (output, mixed_weight)."""
    B, K = x.shape
    N, K2 = w_current.shape
    assert K == K2 and w_pretrained.shape == (N, K) and bias.shape == (N,)

    if (not training) or p <= 0.0:
        # Eval path: no mask draw, no pretrained-weight stream, no weight
        # writeback -- just the plain linear.
        y = jnp.dot(x, w_current.T, preferred_element_type=jnp.float32) + bias
        return y.astype(x.dtype), w_current

    if tn is None:
        tn = _pick_tile(N, prefer_even_count=True)
    if tk is None:
        tk = _pick_tile(K, cap_elems=_W_TILE_ELEM_CAP, other=tn)
    assert N % tn == 0 and K % tk == 0

    thr = min(int(round(float(p) * 2.0 ** 31)), 2 ** 31 - 1)
    seed_arr = jnp.array([int(seed) & 0x7FFFFFFF], dtype=jnp.int32)
    thr_arr = jnp.array([thr], dtype=jnp.int32)
    bias2d = bias.reshape(1, N)

    w_isz = jnp.dtype(w_current.dtype).itemsize
    x_isz = jnp.dtype(x.dtype).itemsize

    # Explicit VMEM budget: 3 weight streams double-buffered + resident x
    # + y tiles + f32 accumulator + compiler headroom.
    vmem_bytes = (3 * 2 * tn * tk * w_isz
                  + 2 * B * K * x_isz
                  + 2 * B * tn * x_isz
                  + B * tn * 4
                  + (8 << 20))
    vmem_bytes = int(min(max(vmem_bytes, 16 << 20), 64 << 20))

    cost = pl.CostEstimate(
        flops=2 * B * N * K,
        bytes_accessed=3 * N * K * w_isz + B * K * x_isz + B * N * x_isz,
        transcendentals=0)

    call_kwargs = {}
    if donate_w_current:
        # w_current is operand index 3 (seed, thr, x, w_current, ...),
        # w_mixed is output index 1.
        call_kwargs["input_output_aliases"] = {3: 1}

    out, w_mixed = pl.pallas_call(
        _mixout_linear_kernel,
        out_shape=(
            jax.ShapeDtypeStruct((B, N), x.dtype),
            jax.ShapeDtypeStruct((N, K), w_current.dtype),
        ),
        grid_spec=pltpu.PrefetchScalarGridSpec(
            num_scalar_prefetch=0,
            grid=(N // tn, K // tk),
            in_specs=[
                pl.BlockSpec(memory_space=pltpu.MemorySpace.SMEM),   # seed
                pl.BlockSpec(memory_space=pltpu.MemorySpace.SMEM),   # threshold
                pl.BlockSpec((B, K), lambda i, k: (0, 0)),           # x (resident)
                pl.BlockSpec((tn, tk), lambda i, k: (i, k)),         # w_current
                pl.BlockSpec((tn, tk), lambda i, k: (i, k)),         # w_pretrained
                pl.BlockSpec((1, tn), lambda i, k: (0, i)),          # bias
            ],
            out_specs=(
                pl.BlockSpec((B, tn), lambda i, k: (0, i)),          # y
                pl.BlockSpec((tn, tk), lambda i, k: (i, k)),         # w_mixed
            ),
            scratch_shapes=[pltpu.VMEM((B, tn), jnp.float32)],
        ),
        compiler_params=pltpu.CompilerParams(
            dimension_semantics=("parallel", "arbitrary"),
            vmem_limit_bytes=vmem_bytes,
        ),
        cost_estimate=cost,
        **call_kwargs,
    )(seed_arr, thr_arr, x, w_current, w_pretrained, bias2d)
    return out, w_mixed


if __name__ == "__main__":
    key = jax.random.PRNGKey(0)
    k_x, k_wc, k_wp, k_b = jax.random.split(key, 4)

    B, K, N = 8, 512, 512          # batch, in_features, out_features
    p = 0.2

    x = jax.random.normal(k_x, (B, K), dtype=jnp.float32)
    w_current = jax.random.normal(k_wc, (N, K), dtype=jnp.float32) * 0.02
    w_pretrained = jax.random.normal(k_wp, (N, K), dtype=jnp.float32) * 0.02
    bias = jax.random.normal(k_b, (N,), dtype=jnp.float32) * 0.01

    # training-mode forward with auto-selected tiles
    y1, wm1 = mixout_linear(x, w_current, w_pretrained, bias,
                            p=p, seed=1234, training=True)
    y1 = jax.block_until_ready(y1)
    wm1 = jax.block_until_ready(wm1)

    # same call with small explicit tiles -> 4x4 grid; mask is hash-of-global-
    # index so the mixed weight must be identical regardless of tiling.
    y2, wm2 = mixout_linear(x, w_current, w_pretrained, bias,
                            p=p, seed=1234, training=True, tn=128, tk=128)
    y2 = jax.block_until_ready(y2)
    wm2 = jax.block_until_ready(wm2)

    assert bool(jnp.all(wm1 == wm2)), "mask is not grid-invariant"
    assert bool(jnp.allclose(y1, y2, atol=1e-4, rtol=1e-4))

    # every mixed entry must come from one of the two source weights
    matches = jnp.logical_or(jnp.isclose(wm1, w_current),
                             jnp.isclose(wm1, w_pretrained))
    assert bool(jnp.all(matches)), "mixed weight contains foreign values"

    # the mask must actually mix (fraction of pretrained entries ~ p)
    frac_pre = float(jnp.mean((wm1 == w_pretrained).astype(jnp.float32)))
    assert 0.05 < frac_pre < 0.5, f"mask fraction {frac_pre} inconsistent with p={p}"

    # output must equal a plain linear with the mixed weight
    y_ref = x @ wm1.T + bias
    assert bool(jnp.allclose(y1, y_ref, atol=1e-4, rtol=1e-4))

    # eval-mode forward (plain linear with current weights, no kernel)
    y_eval, w_eval = mixout_linear(x, w_current, w_pretrained, bias,
                                   p=p, seed=1234, training=False)
    y_eval = jax.block_until_ready(y_eval)
    y_eval_ref = x @ w_current.T + bias
    assert bool(jnp.allclose(y_eval, y_eval_ref, atol=1e-4, rtol=1e-4))
    assert bool(jnp.all(w_eval == w_current))

    print("KERNEL_OK")
</pallas_src>

<mosaic_0001>
module attributes {stable_mosaic.version = 11 : i64} {
  func.func @_mixout_linear_kernel(%arg0: i32, %arg1: i32, %arg2: memref<1xi32, #tpu.memory_space<smem>>, %arg3: memref<1xi32, #tpu.memory_space<smem>>, %arg4: memref<8x512xf32, #tpu.memory_space<vmem>>, %arg5: memref<256x512xf32, #tpu.memory_space<vmem>>, %arg6: memref<256x512xf32, #tpu.memory_space<vmem>>, %arg7: memref<1x256xf32, #tpu.memory_space<vmem>>, %arg8: memref<8x256xf32, #tpu.memory_space<vmem>>, %arg9: memref<256x512xf32, #tpu.memory_space<vmem>>, %arg10: memref<8x256xf32, #tpu.memory_space<vmem>>) attributes {dimension_semantics = [#tpu.dimension_semantics<parallel>, #tpu.dimension_semantics<arbitrary>], iteration_bounds = array<i64: 2, 1>, scalar_prefetch = 0 : i64, scratch_operands = 1 : i64, tpu.core_type = #tpu.core_type<tc>, window_params = [{transform_indices = @transform_0, window_bounds = array<i64: 1>}, {transform_indices = @transform_1, window_bounds = array<i64: 1>}, {pipeline_mode = #tpu.pipeline_mode<synchronous>, transform_indices = @transform_2, window_bounds = array<i64: 8, 512>}, {transform_indices = @transform_3, window_bounds = array<i64: 256, 512>}, {transform_indices = @transform_4, window_bounds = array<i64: 256, 512>}, {transform_indices = @transform_5, window_bounds = array<i64: 1, 256>}, {transform_indices = @transform_6, window_bounds = array<i64: 8, 256>}, {transform_indices = @transform_7, window_bounds = array<i64: 256, 512>}]} {
    %c0 = arith.constant 0 : index
    %0 = memref.load %arg2[%c0] : memref<1xi32, #tpu.memory_space<smem>>
    %1 = tpu.iota {dimensions = array<i32: 0>} : vector<256x1xi32>
    %c256_i32 = arith.constant 256 : i32
    %2 = arith.muli %arg0, %c256_i32 : i32
    %3 = vector.broadcast %2 : i32 to vector<256x1xi32>
    %4 = arith.addi %1, %3 : vector<256x1xi32>
    %5 = tpu.iota {dimensions = array<i32: 1>} : vector<1x512xi32>
    %c512_i32 = arith.constant 512 : i32
    %6 = arith.muli %arg1, %c512_i32 : i32
    %7 = vector.broadcast %6 : i32 to vector<1x512xi32>
    %8 = arith.addi %5, %7 : vector<1x512xi32>
    %c-1640531535_i32 = arith.constant -1640531535 : i32
    %9 = vector.broadcast %c-1640531535_i32 : i32 to vector<256x1xi32>
    %10 = arith.muli %4, %9 : vector<256x1xi32>
    %11 = vector.broadcast %0 : i32 to vector<256x1xi32>
    %12 = arith.addi %10, %11 : vector<256x1xi32>
    %c16_i32 = arith.constant 16 : i32
    %13 = vector.broadcast %c16_i32 : i32 to vector<256x1xi32>
    %14 = arith.shrui %12, %13 : vector<256x1xi32>
    %15 = arith.xori %12, %14 : vector<256x1xi32>
    %c2146121005_i32 = arith.constant 2146121005 : i32
    %16 = vector.broadcast %c2146121005_i32 : i32 to vector<256x1xi32>
    %17 = arith.muli %15, %16 : vector<256x1xi32>
    %c15_i32 = arith.constant 15 : i32
    %18 = vector.broadcast %c15_i32 : i32 to vector<256x1xi32>
    %19 = arith.shrui %17, %18 : vector<256x1xi32>
    %20 = arith.xori %17, %19 : vector<256x1xi32>
    %c-2073254261_i32 = arith.constant -2073254261 : i32
    %21 = vector.broadcast %c-2073254261_i32 : i32 to vector<256x1xi32>
    %22 = arith.muli %20, %21 : vector<256x1xi32>
    %c16_i32_0 = arith.constant 16 : i32
    %23 = vector.broadcast %c16_i32_0 : i32 to vector<256x1xi32>
    %24 = arith.shrui %22, %23 : vector<256x1xi32>
    %25 = arith.xori %22, %24 : vector<256x1xi32>
    %c-2048144777_i32 = arith.constant -2048144777 : i32
    %26 = vector.broadcast %c-2048144777_i32 : i32 to vector<1x512xi32>
    %27 = arith.muli %8, %26 : vector<1x512xi32>
    %c1818371886_i32 = arith.constant 1818371886 : i32
    %28 = arith.xori %0, %c1818371886_i32 : i32
    %29 = vector.broadcast %28 : i32 to vector<1x512xi32>
    %30 = arith.addi %27, %29 : vector<1x512xi32>
    %c16_i32_1 = arith.constant 16 : i32
    %31 = vector.broadcast %c16_i32_1 : i32 to vector<1x512xi32>
    %32 = arith.shrui %30, %31 : vector<1x512xi32>
    %33 = arith.xori %30, %32 : vector<1x512xi32>
    %c2146121005_i32_2 = arith.constant 2146121005 : i32
    %34 = vector.broadcast %c2146121005_i32_2 : i32 to vector<1x512xi32>
    %35 = arith.muli %33, %34 : vector<1x512xi32>
    %c15_i32_3 = arith.constant 15 : i32
    %36 = vector.broadcast %c15_i32_3 : i32 to vector<1x512xi32>
    %37 = arith.shrui %35, %36 : vector<1x512xi32>
    %38 = arith.xori %35, %37 : vector<1x512xi32>
    %c-2073254261_i32_4 = arith.constant -2073254261 : i32
    %39 = vector.broadcast %c-2073254261_i32_4 : i32 to vector<1x512xi32>
    %40 = arith.muli %38, %39 : vector<1x512xi32>
    %c16_i32_5 = arith.constant 16 : i32
    %41 = vector.broadcast %c16_i32_5 : i32 to vector<1x512xi32>
    %42 = arith.shrui %40, %41 : vector<1x512xi32>
    %43 = arith.xori %40, %42 : vector<1x512xi32>
    %44 = vector.broadcast %25 : vector<256x1xi32> to vector<256x512xi32>
    %45 = vector.broadcast %43 : vector<1x512xi32> to vector<256x512xi32>
    %46 = arith.addi %44, %45 : vector<256x512xi32>
    %c-1640531535_i32_6 = arith.constant -1640531535 : i32
    %47 = vector.broadcast %c-1640531535_i32_6 : i32 to vector<256x512xi32>
    %48 = arith.muli %46, %47 : vector<256x512xi32>
    %c16_i32_7 = arith.constant 16 : i32
    %49 = vector.broadcast %c16_i32_7 : i32 to vector<256x512xi32>
    %50 = arith.shrui %48, %49 : vector<256x512xi32>
    %51 = arith.xori %48, %50 : vector<256x512xi32>
    %c1_i32 = arith.constant 1 : i32
    %52 = vector.broadcast %c1_i32 : i32 to vector<256x512xi32>
    %53 = arith.shrui %51, %52 : vector<256x512xi32>
    %c0_8 = arith.constant 0 : index
    %54 = memref.load %arg3[%c0_8] : memref<1xi32, #tpu.memory_space<smem>>
    %55 = vector.broadcast %54 : i32 to vector<256x512xi32>
    %56 = arith.cmpi slt, %53, %55 : vector<256x512xi32>
    %c0_9 = arith.constant 0 : index
    %c0_10 = arith.constant 0 : index
    %57 = vector.load %arg6[%c0_9, %c0_10] : memref<256x512xf32, #tpu.memory_space<vmem>>, vector<256x512xf32>
    %c0_11 = arith.constant 0 : index
    %c0_12 = arith.constant 0 : index
    %58 = vector.load %arg5[%c0_11, %c0_12] : memref<256x512xf32, #tpu.memory_space<vmem>>, vector<256x512xf32>
    %59 = arith.select %56, %57, %58 : vector<256x512xi1>, vector<256x512xf32>
    %c0_13 = arith.constant 0 : index
    %c0_14 = arith.constant 0 : index
    %60 = vector.load %arg9[%c0_13, %c0_14] : memref<256x512xf32, #tpu.memory_space<vmem>>, vector<256x512xf32>
    tpu.vector_store %arg9[%c0_13, %c0_14], %59 {strides = array<i32>} : memref<256x512xf32, #tpu.memory_space<vmem>>, vector<256x512xf32>,
    %c0_i32 = arith.constant 0 : i32
    %61 = arith.cmpi eq, %arg1, %c0_i32 : i32
    %62 = arith.extui %61 : i1 to i32
    %c0_i32_15 = arith.constant 0 : i32
    %63 = arith.cmpi ne, %62, %c0_i32_15 : i32
    scf.if %63 {
      %cst_24 = arith.constant 0.000000e+00 : f32
      %75 = vector.broadcast %cst_24 : f32 to vector<8x256xf32>
      %c0_25 = arith.constant 0 : index
      %c0_26 = arith.constant 0 : index
      %76 = vector.load %arg10[%c0_25, %c0_26] : memref<8x256xf32, #tpu.memory_space<vmem>>, vector<8x256xf32>
      tpu.vector_store %arg10[%c0_25, %c0_26], %75 {strides = array<i32>} : memref<8x256xf32, #tpu.memory_space<vmem>>, vector<8x256xf32>,
    } else {
    }
    %c512_i32_16 = arith.constant 512 : i32
    %64 = arith.muli %arg1, %c512_i32_16 : i32
    %65 = tpu.assume_multiple %64, 512 : i32
    %c0_17 = arith.constant 0 : index
    %66 = arith.index_cast %65 : i32 to index
    %67 = vector.load %arg4[%c0_17, %66] : memref<8x512xf32, #tpu.memory_space<vmem>>, vector<8x512xf32>
    %c0_18 = arith.constant 0 : index
    %c0_19 = arith.constant 0 : index
    %68 = vector.load %arg10[%c0_18, %c0_19] : memref<8x256xf32, #tpu.memory_space<vmem>>, vector<8x256xf32>
    %cst = arith.constant dense<0.000000e+00> : vector<8x256xf32>
    %69 = tpu.matmul %67, %59, %cst {dimension_numbers = #tpu.dot_dimension_numbers<[1], [1], [0], [0], [0, 0, 1, 0], [], []>} : vector<8x512xf32>, vector<256x512xf32>, vector<8x256xf32> -> vector<8x256xf32>
    %70 = arith.addf %68, %69 : vector<8x256xf32>
    %c0_20 = arith.constant 0 : index
    %c0_21 = arith.constant 0 : index
    %71 = vector.load %arg10[%c0_20, %c0_21] : memref<8x256xf32, #tpu.memory_space<vmem>>, vector<8x256xf32>
    tpu.vector_store %arg10[%c0_20, %c0_21], %70 {strides = array<i32>} : memref<8x256xf32, #tpu.memory_space<vmem>>, vector<8x256xf32>,
    %c0_i32_22 = arith.constant 0 : i32
    %72 = arith.cmpi eq, %arg1, %c0_i32_22 : i32
    %73 = arith.extui %72 : i1 to i32
    %c0_i32_23 = arith.constant 0 : i32
    %74 = arith.cmpi ne, %73, %c0_i32_23 : i32
    scf.if %74 {
      %c0_24 = arith.constant 0 : index
      %c0_25 = arith.constant 0 : index
      %75 = vector.load %arg10[%c0_24, %c0_25] : memref<8x256xf32, #tpu.memory_space<vmem>>, vector<8x256xf32>
      %c0_26 = arith.constant 0 : index
      %c0_27 = arith.constant 0 : index
      %76 = vector.load %arg7[%c0_26, %c0_27] : memref<1x256xf32, #tpu.memory_space<vmem>>, vector<1x256xf32>
      %77 = vector.broadcast %76 : vector<1x256xf32> to vector<8x256xf32>
      %78 = arith.addf %75, %77 : vector<8x256xf32>
      %c0_28 = arith.constant 0 : index
      %c0_29 = arith.constant 0 : index
      %79 = vector.load %arg8[%c0_28, %c0_29] : memref<8x256xf32, #tpu.memory_space<vmem>>, vector<8x256xf32>
      tpu.vector_store %arg8[%c0_28, %c0_29], %78 {strides = array<i32>} : memref<8x256xf32, #tpu.memory_space<vmem>>, vector<8x256xf32>,
    } else {
    }
    return
  }
  func.func @transform_0(%arg0: i32, %arg1: i32) -> i32 {
    %c0_i32 = arith.constant 0 : i32
    %c0_i32_0 = arith.constant 0 : i32
    return %c0_i32 : i32
  }
  func.func @transform_1(%arg0: i32, %arg1: i32) -> i32 {
    %c0_i32 = arith.constant 0 : i32
    %c0_i32_0 = arith.constant 0 : i32
    return %c0_i32 : i32
  }
  func.func @transform_2(%arg0: i32, %arg1: i32) -> (i32, i32) {
    %c0_i32 = arith.constant 0 : i32
    %c0_i32_0 = arith.constant 0 : i32
    %c0_i32_1 = arith.constant 0 : i32
    return %c0_i32, %c0_i32_0 : i32, i32
  }
  func.func @transform_3(%arg0: i32, %arg1: i32) -> (i32, i32) {
    %c0_i32 = arith.constant 0 : i32
    return %arg0, %arg1 : i32, i32
  }
  func.func @transform_4(%arg0: i32, %arg1: i32) -> (i32, i32) {
    %c0_i32 = arith.constant 0 : i32
    return %arg0, %arg1 : i32, i32
  }
  func.func @transform_5(%arg0: i32, %arg1: i32) -> (i32, i32) {
    %c0_i32 = arith.constant 0 : i32
    %c0_i32_0 = arith.constant 0 : i32
    return %c0_i32, %arg0 : i32, i32
  }
  func.func @transform_6(%arg0: i32, %arg1: i32) -> (i32, i32) {
    %c0_i32 = arith.constant 0 : i32
    %c0_i32_0 = arith.constant 0 : i32
    return %c0_i32, %arg0 : i32, i32
  }
  func.func @transform_7(%arg0: i32, %arg1: i32) -> (i32, i32) {
    %c0_i32 = arith.constant 0 : i32
    return %arg0, %arg1 : i32, i32
  }
}

</mosaic_0001>

<llo_original>
// kernel: tpu_custom_call.1
$region0: #{tpu_custom_call.1}
  #allocation0 [shape = 'u32[]', space=smem, size = 0x4, offset = 0x4, fixed_abs, tag = 'smem constant byte address 0x4 - core index']
  #allocation1 [shape = 'u32[144,128]{1,0:T(1,128)}', space=vmem, size = 0x12000, scoped, tag = 'internal scratch']
  #allocation2 [shape = 'f32[8,256]{1,0:T(8,128)}', space=vmem, size = 0x2000, scoped, tag = 'scratch operand']
  #allocation3 [shape = 's32[1]{0:T(128)S(6)}', space=smem, size = 0x200, scoped, tag = 'scoped memory for tpu_custom_call.1']
  #allocation4 [shape = 's32[1]{0:T(128)S(6)}', space=smem, size = 0x200, scoped, tag = 'scoped memory for tpu_custom_call.1']
  %s0 = inlined_call_operand.<no memory space> [shape: s32[1], index: 0, kind: input, shape index: {}]
  %s1 = inlined_call_operand.<no memory space> [shape: s32[1], index: 1, kind: input, shape index: {}]
  %s2 = inlined_call_operand.hbm [shape: f32[8,512], index: 2, kind: input, shape index: {}]
  %s3 = inlined_call_operand.hbm [shape: f32[512,512], index: 3, kind: input, shape index: {}]
  %s4 = inlined_call_operand.hbm [shape: f32[512,512], index: 4, kind: input, shape index: {}]
  %s5 = inlined_call_operand.vmem [shape: f32[1,512], index: 5, kind: input, shape index: {}]
  %s6 = inlined_call_operand.hbm [shape: f32[8,512], index: 6, kind: output, shape index: {0}]
  %s7 = inlined_call_operand.hbm [shape: f32[512,512], index: 7, kind: output, shape index: {1}]
  %8 = xla_tuple %s6, %s7
  %s9 = sld [smem:[#allocation0]]
  $region85: #{tpu_custom_call.1} parent=0
    _
  %s11 = ssub.s32 1, %s9
  %s12 = scalar_select 0, %s11, %s9
  %13 = sst [smem:[#allocation3]] %s0
  %14 = sst [smem:[#allocation4]] %s1
  $region1: #{tpu_custom_call.1} parent=0
    #allocation5 [shape = 'u8[16384]{0}', space=vmem, size = 0x4000, scoped, tag = 'input window, operand 2, single buffered']
    #allocation6 [shape = 's32[2]{0}', space=sflag, size = 0x8, scoped, tag = 'scoped memory for tpu_custom_call.1']
    #allocation7 [shape = 's32[2]{0}', space=sflag, size = 0x8, scoped, tag = 'scoped memory for tpu_custom_call.1']
    #allocation8 [shape = 'u8[1048576]{0}', space=vmem, size = 0x100000, scoped, tag = 'input window, operand 3']
    #allocation9 [shape = 's32[2]{0}', space=sflag, size = 0x8, scoped, tag = 'scoped memory for tpu_custom_call.1']
    #allocation10 [shape = 'u8[1048576]{0}', space=vmem, size = 0x100000, scoped, tag = 'input window, operand 4']
    #allocation11 [shape = 'u8[16384]{0}', space=vmem, size = 0x4000, scoped, tag = 'output window, operand 0']
    #allocation12 [shape = 'u8[1048576]{0}', space=vmem, size = 0x100000, scoped, tag = 'output window, operand 1']
    #allocation13 [shape = 's32[2]{0}', space=sflag, size = 0x8, scoped, tag = 'scoped memory for tpu_custom_call.1']
    %15 = vsyncpa [#allocation6], 0
    %16 = vsyncpa [#allocation9], 0
    %s17 = scalar_lea.sflag [#allocation9], 1
    %18 = vsyncpa %s17, 0
    %19 = vsyncpa [#allocation7], 0
    %s20 = scalar_lea.sflag [#allocation7], 1
    %21 = vsyncpa %s20, 0
    %22 = vsyncpa [#allocation13], 0
    %s23 = scalar_lea.sflag [#allocation13], 1
    %24 = vsyncpa %s23, 0
    loop: start=0, step=1, limit=4
    $region2: #{tpu_custom_call.1} parent=1 // loop_pre_header
      _
    $region3: #{tpu_custom_call.1} parent=1 // loop_header
      %s26 = sphi 0, %s30
      %p27 = scmp.ge.s32.totalorder %s26, 4
      %s33 = sphi 0, %s45
      %s34 = sphi 0, %s41
      %s35 = sphi 0, %s33
      %s36 = sphi 0, %s34
      %s37 = sphi 0, %s35
      %s38 = sphi 0, %s36
      %s46 = sphi 0, %s46
      %s48 = sphi 0, %s46
      %s49 = sphi 0, %s48
      %s63 = sphi 0, %s49
      %s67 = sphi 0, %s67
      %s69 = sphi 0, %s67
      %s70 = sphi 0, %s69
      %s84 = sphi 0, %s70
      %s88 = sphi 0, %s88
      %s90 = sphi 0, %s88
      %s91 = sphi 0, %s90
      %s105 = sphi 0, %s91
      %s113 = sphi 0, %s115
      %s116 = sphi 0, %s113
      %s117 = sphi 0, %s116
      %s133 = sphi 0, %s117
      %s141 = sphi 0, %s143
      %s144 = sphi 0, %s141
      %s145 = sphi 0, %s144
      %s161 = sphi 0, %s145
      %s167 = sphi 0, %s169
      %s170 = sphi 0, %s167
      %s171 = sphi 0, %s170
      %s187 = sphi 0, %s171
      %s193 = sphi 0, %s195
      %s196 = sphi 0, %s193
      %s197 = sphi 0, %s196
      %s213 = sphi 0, %s197
      %s221 = sphi 0, %s223
      %s224 = sphi 0, %s221
      %s225 = sphi 0, %s224
      %s241 = sphi 0, %s225
    $region4: #{tpu_custom_call.1} parent=1 // loop_header_branch
      %29 = sbr.rel (%p27) target = $region8
    $region5: #{tpu_custom_call.1} parent=1 // loop_body
      %s31 = ssub.s32 %s26, 1
      %s32 = ssub.s32 %s26, 2
      %s39 = sadd.s32 1, %s34
      %p40 = scmp.ge.s32.totalorder %s39, 1
      %s41 = scalar_select %p40, 0, %s39
      %s42 = sadd.s32 1, %s33
      %s43 = scalar_select %p40, %s42, %s33
      %p44 = scmp.ge.s32.totalorder %s43, 2
      %s45 = scalar_select %p44, 0, %s43
      %s47 = sadd.s32 %s46, 1
      %p50 = scmp.eq.s32.totalorder %s26, 1
      %p51 = scmp.ne.s32.totalorder %s46, %s48
      %p52 = scmp.eq.s32.totalorder %s26, 0
      %p53 = por %p51, %p52
      %p54 = scmp.ne.s32.totalorder %s46, %s48
      %p55 = scmp.eq.s32.totalorder %s31, 1
      %p56 = por %p54, %p55
      %p57 = scmp.ne.s32.totalorder %s48, %s49
      %p58 = scmp.eq.s32.totalorder %s31, 0
      %p59 = por %p57, %p58
      %p60 = scmp.ne.s32.totalorder %s48, %s49
      %p61 = scmp.eq.s32.totalorder %s32, 1
      %p62 = por %p60, %p61
      %p64 = scmp.ne.s32.totalorder %s49, %s63
      %p65 = scmp.eq.s32.totalorder %s32, 0
      %p66 = por %p64, %p65
      %s68 = sadd.s32 %s67, 1
      %p71 = scmp.eq.s32.totalorder %s26, 1
      %p72 = scmp.ne.s32.totalorder %s67, %s69
      %p73 = scmp.eq.s32.totalorder %s26, 0
      %p74 = por %p72, %p73
      %p75 = scmp.ne.s32.totalorder %s67, %s69
      %p76 = scmp.eq.s32.totalorder %s31, 1
      %p77 = por %p75, %p76
      %p78 = scmp.ne.s32.totalorder %s69, %s70
      %p79 = scmp.eq.s32.totalorder %s31, 0
      %p80 = por %p78, %p79
      %p81 = scmp.ne.s32.totalorder %s69, %s70
      %p82 = scmp.eq.s32.totalorder %s32, 1
      %p83 = por %p81, %p82
      %p85 = scmp.ne.s32.totalorder %s70, %s84
      %p86 = scmp.eq.s32.totalorder %s32, 0
      %p87 = por %p85, %p86
      %s89 = sadd.s32 %s88, 1
      %p92 = scmp.eq.s32.totalorder %s26, 1
      %p93 = scmp.ne.s32.totalorder %s88, %s90
      %p94 = scmp.eq.s32.totalorder %s26, 0
      %p95 = por %p93, %p94
      %p96 = scmp.ne.s32.totalorder %s88, %s90
      %p97 = scmp.eq.s32.totalorder %s31, 1
      %p98 = por %p96, %p97
      %p99 = scmp.ne.s32.totalorder %s90, %s91
      %p100 = scmp.eq.s32.totalorder %s31, 0
      %p101 = por %p99, %p100
      %p102 = scmp.ne.s32.totalorder %s90, %s91
      %p103 = scmp.eq.s32.totalorder %s32, 1
      %p104 = por %p102, %p103
      %p106 = scmp.ne.s32.totalorder %s91, %s105
      %p107 = scmp.eq.s32.totalorder %s32, 0
      %p108 = por %p106, %p107
      %s109 = ssub.s32 %s33, %s45
      %s110 = ssub.s32 %s34, %s41
      %s111 = sor.u32 %s109, %s110
      %p112 = scmp.eq.s32.totalorder %s111, 0
      %s114 = sadd.s32 %s113, 1
      %s115 = scalar_select %p112, %s113, %s114
      %p118 = pneg %p112
      %p119 = scmp.eq.s32.totalorder %s26, 1
      %p120 = por %p118, %p119
      %p121 = scmp.ne.s32.totalorder %s113, %s116
      %p122 = scmp.eq.s32.totalorder %s26, 0
      %p123 = por %p121, %p122
      %p124 = scmp.ne.s32.totalorder %s113, %s116
      %p125 = scmp.eq.s32.totalorder %s31, 1
      %p126 = por %p124, %p125
      %p127 = scmp.ne.s32.totalorder %s116, %s117
      %p128 = scmp.eq.s32.totalorder %s31, 0
      %p129 = por %p127, %p128
      %p130 = scmp.ne.s32.totalorder %s116, %s117
      %p131 = scmp.eq.s32.totalorder %s32, 1
      %p132 = por %p130, %p131
      %p134 = scmp.ne.s32.totalorder %s117, %s133
      %p135 = scmp.eq.s32.totalorder %s32, 0
      %p136 = por %p134, %p135
      %s137 = ssub.s32 %s33, %s45
      %s138 = ssub.s32 %s34, %s41
      %s139 = sor.u32 %s137, %s138
      %p140 = scmp.eq.s32.totalorder %s139, 0
      %s142 = sadd.s32 %s141, 1
      %s143 = scalar_select %p140, %s141, %s142
      %p146 = pneg %p140
      %p147 = scmp.eq.s32.totalorder %s26, 1
      %p148 = por %p146, %p147
      %p149 = scmp.ne.s32.totalorder %s141, %s144
      %p150 = scmp.eq.s32.totalorder %s26, 0
      %p151 = por %p149, %p150
      %p152 = scmp.ne.s32.totalorder %s141, %s144
      %p153 = scmp.eq.s32.totalorder %s31, 1
      %p154 = por %p152, %p153
      %p155 = scmp.ne.s32.totalorder %s144, %s145
      %p156 = scmp.eq.s32.totalorder %s31, 0
      %p157 = por %p155, %p156
      %p158 = scmp.ne.s32.totalorder %s144, %s145
      %p159 = scmp.eq.s32.totalorder %s32, 1
      %p160 = por %p158, %p159
      %p162 = scmp.ne.s32.totalorder %s145, %s161
      %p163 = scmp.eq.s32.totalorder %s32, 0
      %p164 = por %p162, %p163
      %s165 = ssub.s32 %s33, %s45
      %p166 = scmp.eq.s32.totalorder %s165, 0
      %s168 = sadd.s32 %s167, 1
      %s169 = scalar_select %p166, %s167, %s168
      %p172 = pneg %p166
      %p173 = scmp.eq.s32.totalorder %s26, 1
      %p174 = por %p172, %p173
      %p175 = scmp.ne.s32.totalorder %s167, %s170
      %p176 = scmp.eq.s32.totalorder %s26, 0
      %p177 = por %p175, %p176
      %p178 = scmp.ne.s32.totalorder %s167, %s170
      %p179 = scmp.eq.s32.totalorder %s31, 1
      %p180 = por %p178, %p179
      %p181 = scmp.ne.s32.totalorder %s170, %s171
      %p182 = scmp.eq.s32.totalorder %s31, 0
      %p183 = por %p181, %p182
      %p184 = scmp.ne.s32.totalorder %s170, %s171
      %p185 = scmp.eq.s32.totalorder %s32, 1
      %p186 = por %p184, %p185
      %p188 = scmp.ne.s32.totalorder %s171, %s187
      %p189 = scmp.eq.s32.totalorder %s32, 0
      %p190 = por %p188, %p189
      %s191 = ssub.s32 %s33, %s45
      %p192 = scmp.eq.s32.totalorder %s191, 0
      %s194 = sadd.s32 %s193, 1
      %s195 = scalar_select %p192, %s193, %s194
      %p198 = pneg %p192
      %p199 = scmp.eq.s32.totalorder %s26, 1
      %p200 = por %p198, %p199
      %p201 = scmp.ne.s32.totalorder %s193, %s196
      %p202 = scmp.eq.s32.totalorder %s26, 0
      %p203 = por %p201, %p202
      %p204 = scmp.ne.s32.totalorder %s193, %s196
      %p205 = scmp.eq.s32.totalorder %s31, 1
      %p206 = por %p204, %p205
      %p207 = scmp.ne.s32.totalorder %s196, %s197
      %p208 = scmp.eq.s32.totalorder %s31, 0
      %p209 = por %p207, %p208
      %p210 = scmp.ne.s32.totalorder %s196, %s197
      %p211 = scmp.eq.s32.totalorder %s32, 1
      %p212 = por %p210, %p211
      %p214 = scmp.ne.s32.totalorder %s197, %s213
      %p215 = scmp.eq.s32.totalorder %s32, 0
      %p216 = por %p214, %p215
      %s217 = ssub.s32 %s33, %s45
      %s218 = ssub.s32 %s34, %s41
      %s219 = sor.u32 %s217, %s218
      %p220 = scmp.eq.s32.totalorder %s219, 0
      %s222 = sadd.s32 %s221, 1
      %s223 = scalar_select %p220, %s221, %s222
      %p226 = pneg %p220
      %p227 = scmp.eq.s32.totalorder %s26, 1
      %p228 = por %p226, %p227
      %p229 = scmp.ne.s32.totalorder %s221, %s224
      %p230 = scmp.eq.s32.totalorder %s26, 0
      %p231 = por %p229, %p230
      %p232 = scmp.ne.s32.totalorder %s221, %s224
      %p233 = scmp.eq.s32.totalorder %s31, 1
      %p234 = por %p232, %p233
      %p235 = scmp.ne.s32.totalorder %s224, %s225
      %p236 = scmp.eq.s32.totalorder %s31, 0
      %p237 = por %p235, %p236
      %p238 = scmp.ne.s32.totalorder %s224, %s225
      %p239 = scmp.eq.s32.totalorder %s32, 1
      %p240 = por %p238, %p239
      %p242 = scmp.ne.s32.totalorder %s225, %s241
      %p243 = scmp.eq.s32.totalorder %s32, 0
      %p244 = por %p242, %p243
      %p245 = scmp.le.s32.totalorder 1, %s26
      %p246 = scmp.lt.s32.totalorder %s26, 3
      %p247 = pnand %p245, %p246
      %p248 = pneg %p247
      // Predicated region
      $region9: #{tpu_custom_call.1} parent=5 // pred_check
        _
      $region10: #{tpu_custom_call.1} parent=5 // pred_check_branch
        %250 = sbr.rel (%p247) target = $region12
      $region11: #{tpu_custom_call.1} parent=5 // pred_region
        %s251 = ssub.s32 %s26, 1
        // Predicated region
        $region13: #{tpu_custom_call.1} parent=11 // pred_check
          %p252 = pneg %p59
        $region14: #{tpu_custom_call.1} parent=11 // pred_check_branch
          %254 = sbr.rel (%p252) target = $region16
        $region15: #{tpu_custom_call.1} parent=11 // pred_region
          _
        $region16: #{tpu_custom_call.1} parent=11 // pred_fallthru
          _
        // Predicated region
        $region17: #{tpu_custom_call.1} parent=11 // pred_check
          %p255 = pneg %p80
        $region18: #{tpu_custom_call.1} parent=11 // pred_check_branch
          %257 = sbr.rel (%p255) target = $region20
        $region19: #{tpu_custom_call.1} parent=11 // pred_region
          _
        $region20: #{tpu_custom_call.1} parent=11 // pred_fallthru
          _
        // Predicated region
        $region21: #{tpu_custom_call.1} parent=11 // pred_check
          %p258 = pneg %p101
        $region22: #{tpu_custom_call.1} parent=11 // pred_check_branch
          %260 = sbr.rel (%p258) target = $region24
        $region23: #{tpu_custom_call.1} parent=11 // pred_region
          %s262 = ssub.s32 512, 512
          %263 = vsyncadd [#allocation6], %s262
          %s265 = sshll.u32 [#allocation5], 4
          %s266 = int_to_ptr.vmem [resolvable:$true] %s265
          %268 = dma.hbm_to_vmem [thread:$0]  %s2, 512, %s266, [#allocation6]
        $region24: #{tpu_custom_call.1} parent=11 // pred_fallthru
          _
      $region12: #{tpu_custom_call.1} parent=5 // pred_fallthru
        _
      %p269 = scmp.lt.s32.totalorder %s26, 2
      // Predicated region
      $region25: #{tpu_custom_call.1} parent=5 // pred_check
        %p270 = pneg %p269
      $region26: #{tpu_custom_call.1} parent=5 // pred_check_branch
        %272 = sbr.rel (%p270) target = $region28
      $region27: #{tpu_custom_call.1} parent=5 // pred_region
        // Predicated region
        $region29: #{tpu_custom_call.1} parent=27 // pred_check
          %p273 = pneg %p123
        $region30: #{tpu_custom_call.1} parent=27 // pred_check_branch
          %275 = sbr.rel (%p273) target = $region32
        $region31: #{tpu_custom_call.1} parent=27 // pred_region
          %s276 = sand.u32 %s26, 1
          %s277 = scalar_lea.sflag [#allocation9], %s276
          %s278 = sand.u32 %s113, 1
          %s279 = smul.addr %s278, 1024
          %s280 = scalar_lea.vmem [#allocation8], %s279
          %s281 = smul.u32 32, %s33
          %s282 = smul.u32 4, %s34
          %s284 = ssub.s32 16384, 16384
          %285 = vsyncadd %s277, %s284
          %s286 = smul.addr %s281, 4
          %s287 = sadd.s32 %s282, %s286
          %s288 = smul.addr %s287, 128
          %s289 = scalar_lea.hbm %s3, %s288
          %s290 = sshll.u32 %s280, 4
          %s291 = int_to_ptr.vmem [resolvable:$true] %s290
          %296 = dma.hbm_to_vmem [thread:$0]  %s289, 16384, %s291, %s277, 512, 512, 32
        $region32: #{tpu_custom_call.1} parent=27 // pred_fallthru
          _
        // Predicated region
        $region33: #{tpu_custom_call.1} parent=27 // pred_check
          %p297 = pneg %p151
        $region34: #{tpu_custom_call.1} parent=27 // pred_check_branch
          %299 = sbr.rel (%p297) target = $region36
        $region35: #{tpu_custom_call.1} parent=27 // pred_region
          %s300 = sand.u32 %s26, 1
          %s301 = scalar_lea.sflag [#allocation9], %s300
          %s302 = sand.u32 %s141, 1
          %s303 = smul.addr %s302, 1024
          %s304 = scalar_lea.vmem [#allocation10], %s303
          %s305 = smul.u32 32, %s33
          %s306 = smul.u32 4, %s34
          %s308 = ssub.s32 16384, 16384
          %309 = vsyncadd %s301, %s308
          %s310 = smul.addr %s305, 4
          %s311 = sadd.s32 %s306, %s310
          %s312 = smul.addr %s311, 128
          %s313 = scalar_lea.hbm %s4, %s312
          %s314 = sshll.u32 %s304, 4
          %s315 = int_to_ptr.vmem [resolvable:$true] %s314
          %320 = dma.hbm_to_vmem [thread:$0]  %s313, 16384, %s315, %s301, 512, 512, 32
        $region36: #{tpu_custom_call.1} parent=27 // pred_fallthru
          _
        // Predicated region
        $region37: #{tpu_custom_call.1} parent=27 // pred_check
          %p321 = pneg %p177
        $region38: #{tpu_custom_call.1} parent=27 // pred_check_branch
          %323 = sbr.rel (%p321) target = $region40
        $region39: #{tpu_custom_call.1} parent=27 // pred_region
          %s324 = smul.u32 2, %s33
          %p325 = scmp.lt.s32.totalorder %s324, 3
          %s326 = scalar_select %p325, %s324, 3
          %s327 = scalar_lea.vmem %s5, %s326
          %s328 = smul.u32 2, %s33
        $region40: #{tpu_custom_call.1} parent=27 // pred_fallthru
          _
      $region28: #{tpu_custom_call.1} parent=5 // pred_fallthru
        _
      %p329 = scmp.le.s32.totalorder 1, %s26
      %p330 = scmp.lt.s32.totalorder %s26, 3
      %p331 = pnand %p329, %p330
      %p332 = pneg %p331
      // Predicated region
      $region41: #{tpu_custom_call.1} parent=5 // pred_check
        _
      $region42: #{tpu_custom_call.1} parent=5 // pred_check_branch
        %334 = sbr.rel (%p331) target = $region44
      $region43: #{tpu_custom_call.1} parent=5 // pred_region
        %s335 = ssub.s32 %s26, 1
        // Predicated region
        $region45: #{tpu_custom_call.1} parent=43 // pred_check
          %p336 = pneg %p101
        $region46: #{tpu_custom_call.1} parent=43 // pred_check_branch
          %338 = sbr.rel (%p336) target = $region48
        $region47: #{tpu_custom_call.1} parent=43 // pred_region
          %339 = dma.done [#allocation6], 512
        $region48: #{tpu_custom_call.1} parent=43 // pred_fallthru
          _
        %s340 = sand.u32 %s31, 1
        %s341 = scalar_lea.sflag [#allocation9], %s340
        %s342 = sand.u32 %s116, 1
        %s343 = smul.addr %s342, 1024
        %s344 = scalar_lea.vmem [#allocation8], %s343
        // Predicated region
        $region49: #{tpu_custom_call.1} parent=43 // pred_check
          %p345 = pneg %p129
        $region50: #{tpu_custom_call.1} parent=43 // pred_check_branch
          %347 = sbr.rel (%p345) target = $region52
        $region51: #{tpu_custom_call.1} parent=43 // pred_region
          %348 = dma.done %s341, 16384
        $region52: #{tpu_custom_call.1} parent=43 // pred_fallthru
          _
        %s349 = sand.u32 %s31, 1
        %s350 = scalar_lea.sflag [#allocation9], %s349
        %s351 = sand.u32 %s144, 1
        %s352 = smul.addr %s351, 1024
        %s353 = scalar_lea.vmem [#allocation10], %s352
        // Predicated region
        $region53: #{tpu_custom_call.1} parent=43 // pred_check
          %p354 = pneg %p157
        $region54: #{tpu_custom_call.1} parent=43 // pred_check_branch
          %356 = sbr.rel (%p354) target = $region56
        $region55: #{tpu_custom_call.1} parent=43 // pred_region
          %357 = dma.done %s350, 16384
        $region56: #{tpu_custom_call.1} parent=43 // pred_fallthru
          _
        %p358 = pneg %p59
        %p359 = pneg %p56
        %p360 = pneg %p80
        %p361 = pneg %p77
        %p362 = pneg %p101
        %p363 = pneg %p98
        %s364 = sand.u32 %s31, 1
        %s365 = scalar_lea.sflag [#allocation9], %s364
        %s366 = sand.u32 %s116, 1
        %s367 = smul.addr %s366, 1024
        %s368 = scalar_lea.vmem [#allocation8], %s367
        %p369 = pneg %p129
        %p370 = pneg %p126
        %s371 = sand.u32 %s31, 1
        %s372 = scalar_lea.sflag [#allocation9], %s371
        %s373 = sand.u32 %s144, 1
        %s374 = smul.addr %s373, 1024
        %s375 = scalar_lea.vmem [#allocation10], %s374
        %p376 = pneg %p157
        %p377 = pneg %p154
        %s378 = smul.u32 2, %s35
        %p379 = scmp.lt.s32.totalorder %s378, 3
        %s380 = scalar_select %p379, %s378, 3
        %s381 = scalar_lea.vmem %s5, %s380
        %p382 = pneg %p183
        %p383 = pneg %p180
        %p384 = pneg %p209
        %p385 = pneg %p206
        %s386 = sand.u32 %s196, 1
        %s387 = scalar_lea.sflag [#allocation7], %s386
        %s388 = sand.u32 %s196, 1
        %s389 = smul.addr %s388, 16
        %s390 = scalar_lea.vmem [#allocation11], %s389
        %p391 = pneg %p237
        %p392 = pneg %p234
        %s393 = sand.u32 %s224, 1
        %s394 = scalar_lea.sflag [#allocation13], %s393
        %s395 = sand.u32 %s224, 1
        %s396 = smul.addr %s395, 1024
        %s397 = scalar_lea.vmem [#allocation12], %s396
        %s398 = smul.u32 32, %s35
        %s399 = smul.u32 4, %s36
        %s400 = smul.u32 32, %s35
        %s401 = smul.u32 4, %s36
        %s402 = smul.u32 2, %s35
        %p403 = scmp.lt.s32.totalorder %s402, 3
        %s404 = scalar_select %p403, %s402, 3
        %s405 = scalar_lea.vmem %s5, %s404
        %s406 = smul.u32 2, %s35
        %s407 = smul.u32 2, %s35
        %s408 = smul.u32 32, %s35
        %s409 = smul.u32 4, %s36
        %s410 = sld [smem:[#allocation3]]
        %v411 = vlaneseq
        %v412 = vshrl.u32 %v411, 7
        %v413 = vadd.s32 %v412, 8
        %v414 = vadd.s32 %v412, 16
        %v415 = vadd.s32 %v412, 24
        %v416 = vadd.s32 %v412, 32
        %v417 = vadd.s32 %v412, 40
        %v418 = vadd.s32 %v412, 48
        %v419 = vadd.s32 %v412, 56
        %v420 = vadd.s32 %v412, 64
        %v421 = vadd.s32 %v412, 72
        %v422 = vadd.s32 %v412, 80
        %v423 = vadd.s32 %v412, 88
        %v424 = vadd.s32 %v412, 96
        %v425 = vadd.s32 %v412, 104
        %v426 = vadd.s32 %v412, 112
        %v427 = vadd.s32 %v412, 120
        %v428 = vadd.s32 %v412, 128
        %v429 = vadd.s32 %v412, 136
        %v430 = vadd.s32 %v412, 144
        %v431 = vadd.s32 %v412, 152
        %v432 = vadd.s32 %v412, 160
        %v433 = vadd.s32 %v412, 168
        %v434 = vadd.s32 %v412, 176
        %v435 = vadd.s32 %v412, 184
        %v436 = vadd.s32 %v412, 192
        %v437 = vadd.s32 %v412, 200
        %v438 = vadd.s32 %v412, 208
        %v439 = vadd.s32 %v412, 216
        %v440 = vadd.s32 %v412, 224
        %v441 = vadd.s32 %v412, 232
        %v442 = vadd.s32 %v412, 240
        %v443 = vadd.s32 %v412, 248
        %s444 = smul.u32 %s35, 256
        %v445 = vstv %s444
        %v446 = vadd.s32 %v412, %v445
        %v447 = vadd.s32 %v413, %v445
        %v448 = vadd.s32 %v414, %v445
        %v449 = vadd.s32 %v415, %v445
        %v450 = vadd.s32 %v416, %v445
        %v451 = vadd.s32 %v417, %v445
        %v452 = vadd.s32 %v418, %v445
        %v453 = vadd.s32 %v419, %v445
        %v454 = vadd.s32 %v420, %v445
        %v455 = vadd.s32 %v421, %v445
        %v456 = vadd.s32 %v422, %v445
        %v457 = vadd.s32 %v423, %v445
        %v458 = vadd.s32 %v424, %v445
        %v459 = vadd.s32 %v425, %v445
        %v460 = vadd.s32 %v426, %v445
        %v461 = vadd.s32 %v427, %v445
        %v462 = vadd.s32 %v428, %v445
        %v463 = vadd.s32 %v429, %v445
        %v464 = vadd.s32 %v430, %v445
        %v465 = vadd.s32 %v431, %v445
        %v466 = vadd.s32 %v432, %v445
        %v467 = vadd.s32 %v433, %v445
        %v468 = vadd.s32 %v434, %v445
        %v469 = vadd.s32 %v435, %v445
        %v470 = vadd.s32 %v436, %v445
        %v471 = vadd.s32 %v437, %v445
        %v472 = vadd.s32 %v438, %v445
        %v473 = vadd.s32 %v439, %v445
        %v474 = vadd.s32 %v440, %v445
        %v475 = vadd.s32 %v441, %v445
        %v476 = vadd.s32 %v442, %v445
        %v477 = vadd.s32 %v443, %v445
        %v478 = vlaneseq
        %v479 = vand.u32 %v478, 127
        %v480 = vadd.s32 %v479, 128
        %v481 = vadd.s32 %v479, 256
        %v482 = vadd.s32 %v479, 384
        %s483 = smul.u32 %s36, 512
        %v484 = vstv %s483
        %v485 = vadd.s32 %v479, %v484
        %v486 = vadd.s32 %v480, %v484
        %v487 = vadd.s32 %v481, %v484
        %v488 = vadd.s32 %v482, %v484
        %v489 = vmul.u32 %v446, 2654435761
        %v490 = vmul.u32 %v447, 2654435761
        %v491 = vmul.u32 %v448, 2654435761
        %v492 = vmul.u32 %v449, 2654435761
        %v493 = vmul.u32 %v450, 2654435761
        %v494 = vmul.u32 %v451, 2654435761
        %v495 = vmul.u32 %v452, 2654435761
        %v496 = vmul.u32 %v453, 2654435761
        %v497 = vmul.u32 %v454, 2654435761
        %v498 = vmul.u32 %v455, 2654435761
        %v499 = vmul.u32 %v456, 2654435761
        %v500 = vmul.u32 %v457, 2654435761
        %v501 = vmul.u32 %v458, 2654435761
        %v502 = vmul.u32 %v459, 2654435761
        %v503 = vmul.u32 %v460, 2654435761
        %v504 = vmul.u32 %v461, 2654435761
        %v505 = vmul.u32 %v462, 2654435761
        %v506 = vmul.u32 %v463, 2654435761
        %v507 = vmul.u32 %v464, 2654435761
        %v508 = vmul.u32 %v465, 2654435761
        %v509 = vmul.u32 %v466, 2654435761
        %v510 = vmul.u32 %v467, 2654435761
        %v511 = vmul.u32 %v468, 2654435761
        %v512 = vmul.u32 %v469, 2654435761
        %v513 = vmul.u32 %v470, 2654435761
        %v514 = vmul.u32 %v471, 2654435761
        %v515 = vmul.u32 %v472, 2654435761
        %v516 = vmul.u32 %v473, 2654435761
        %v517 = vmul.u32 %v474, 2654435761
        %v518 = vmul.u32 %v475, 2654435761
        %v519 = vmul.u32 %v476, 2654435761
        %v520 = vmul.u32 %v477, 2654435761
        %v521 = vstv %s410
        %v522 = vadd.s32 %v489, %v521
        %v523 = vadd.s32 %v490, %v521
        %v524 = vadd.s32 %v491, %v521
        %v525 = vadd.s32 %v492, %v521
        %v526 = vadd.s32 %v493, %v521
        %v527 = vadd.s32 %v494, %v521
        %v528 = vadd.s32 %v495, %v521
        %v529 = vadd.s32 %v496, %v521
        %v530 = vadd.s32 %v497, %v521
        %v531 = vadd.s32 %v498, %v521
        %v532 = vadd.s32 %v499, %v521
        %v533 = vadd.s32 %v500, %v521
        %v534 = vadd.s32 %v501, %v521
        %v535 = vadd.s32 %v502, %v521
        %v536 = vadd.s32 %v503, %v521
        %v537 = vadd.s32 %v504, %v521
        %v538 = vadd.s32 %v505, %v521
        %v539 = vadd.s32 %v506, %v521
        %v540 = vadd.s32 %v507, %v521
        %v541 = vadd.s32 %v508, %v521
        %v542 = vadd.s32 %v509, %v521
        %v543 = vadd.s32 %v510, %v521
        %v544 = vadd.s32 %v511, %v521
        %v545 = vadd.s32 %v512, %v521
        %v546 = vadd.s32 %v513, %v521
        %v547 = vadd.s32 %v514, %v521
        %v548 = vadd.s32 %v515, %v521
        %v549 = vadd.s32 %v516, %v521
        %v550 = vadd.s32 %v517, %v521
        %v551 = vadd.s32 %v518, %v521
        %v552 = vadd.s32 %v519, %v521
        %v553 = vadd.s32 %v520, %v521
        %v554 = vshrl.u32 %v522, 16
        %v555 = vshrl.u32 %v523, 16
        %v556 = vshrl.u32 %v524, 16
        %v557 = vshrl.u32 %v525, 16
        %v558 = vshrl.u32 %v526, 16
        %v559 = vshrl.u32 %v527, 16
        %v560 = vshrl.u32 %v528, 16
        %v561 = vshrl.u32 %v529, 16
        %v562 = vshrl.u32 %v530, 16
        %v563 = vshrl.u32 %v531, 16
        %v564 = vshrl.u32 %v532, 16
        %v565 = vshrl.u32 %v533, 16
        %v566 = vshrl.u32 %v534, 16
        %v567 = vshrl.u32 %v535, 16
        %v568 = vshrl.u32 %v536, 16
        %v569 = vshrl.u32 %v537, 16
        %v570 = vshrl.u32 %v538, 16
        %v571 = vshrl.u32 %v539, 16
        %v572 = vshrl.u32 %v540, 16
        %v573 = vshrl.u32 %v541, 16
        %v574 = vshrl.u32 %v542, 16
        %v575 = vshrl.u32 %v543, 16
        %v576 = vshrl.u32 %v544, 16
        %v577 = vshrl.u32 %v545, 16
        %v578 = vshrl.u32 %v546, 16
        %v579 = vshrl.u32 %v547, 16
        %v580 = vshrl.u32 %v548, 16
        %v581 = vshrl.u32 %v549, 16
        %v582 = vshrl.u32 %v550, 16
        %v583 = vshrl.u32 %v551, 16
        %v584 = vshrl.u32 %v552, 16
        %v585 = vshrl.u32 %v553, 16
        %v586 = vxor.u32 %v522, %v554
        %v587 = vxor.u32 %v523, %v555
        %v588 = vxor.u32 %v524, %v556
        %v589 = vxor.u32 %v525, %v557
        %v590 = vxor.u32 %v526, %v558
        %v591 = vxor.u32 %v527, %v559
        %v592 = vxor.u32 %v528, %v560
        %v593 = vxor.u32 %v529, %v561
        %v594 = vxor.u32 %v530, %v562
        %v595 = vxor.u32 %v531, %v563
        %v596 = vxor.u32 %v532, %v564
        %v597 = vxor.u32 %v533, %v565
        %v598 = vxor.u32 %v534, %v566
        %v599 = vxor.u32 %v535, %v567
        %v600 = vxor.u32 %v536, %v568
        %v601 = vxor.u32 %v537, %v569
        %v602 = vxor.u32 %v538, %v570
        %v603 = vxor.u32 %v539, %v571
        %v604 = vxor.u32 %v540, %v572
        %v605 = vxor.u32 %v541, %v573
        %v606 = vxor.u32 %v542, %v574
        %v607 = vxor.u32 %v543, %v575
        %v608 = vxor.u32 %v544, %v576
        %v609 = vxor.u32 %v545, %v577
        %v610 = vxor.u32 %v546, %v578
        %v611 = vxor.u32 %v547, %v579
        %v612 = vxor.u32 %v548, %v580
        %v613 = vxor.u32 %v549, %v581
        %v614 = vxor.u32 %v550, %v582
        %v615 = vxor.u32 %v551, %v583
        %v616 = vxor.u32 %v552, %v584
        %v617 = vxor.u32 %v553, %v585
        %v618 = vmul.u32 %v586, 2146121005
        %v619 = vmul.u32 %v587, 2146121005
        %v620 = vmul.u32 %v588, 2146121005
        %v621 = vmul.u32 %v589, 2146121005
        %v622 = vmul.u32 %v590, 2146121005
        %v623 = vmul.u32 %v591, 2146121005
        %v624 = vmul.u32 %v592, 2146121005
        %v625 = vmul.u32 %v593, 2146121005
        %v626 = vmul.u32 %v594, 2146121005
        %v627 = vmul.u32 %v595, 2146121005
        %v628 = vmul.u32 %v596, 2146121005
        %v629 = vmul.u32 %v597, 2146121005
        %v630 = vmul.u32 %v598, 2146121005
        %v631 = vmul.u32 %v599, 2146121005
        %v632 = vmul.u32 %v600, 2146121005
        %v633 = vmul.u32 %v601, 2146121005
        %v634 = vmul.u32 %v602, 2146121005
        %v635 = vmul.u32 %v603, 2146121005
        %v636 = vmul.u32 %v604, 2146121005
        %v637 = vmul.u32 %v605, 2146121005
        %v638 = vmul.u32 %v606, 2146121005
        %v639 = vmul.u32 %v607, 2146121005
        %v640 = vmul.u32 %v608, 2146121005
        %v641 = vmul.u32 %v609, 2146121005
        %v642 = vmul.u32 %v610, 2146121005
        %v643 = vmul.u32 %v611, 2146121005
        %v644 = vmul.u32 %v612, 2146121005
        %v645 = vmul.u32 %v613, 2146121005
        %v646 = vmul.u32 %v614, 2146121005
        %v647 = vmul.u32 %v615, 2146121005
        %v648 = vmul.u32 %v616, 2146121005
        %v649 = vmul.u32 %v617, 2146121005
        %v650 = vshrl.u32 %v618, 15
        %v651 = vshrl.u32 %v619, 15
        %v652 = vshrl.u32 %v620, 15
        %v653 = vshrl.u32 %v621, 15
        %v654 = vshrl.u32 %v622, 15
        %v655 = vshrl.u32 %v623, 15
        %v656 = vshrl.u32 %v624, 15
        %v657 = vshrl.u32 %v625, 15
        %v658 = vshrl.u32 %v626, 15
        %v659 = vshrl.u32 %v627, 15
        %v660 = vshrl.u32 %v628, 15
        %v661 = vshrl.u32 %v629, 15
        %v662 = vshrl.u32 %v630, 15
        %v663 = vshrl.u32 %v631, 15
        %v664 = vshrl.u32 %v632, 15
        %v665 = vshrl.u32 %v633, 15
        %v666 = vshrl.u32 %v634, 15
        %v667 = vshrl.u32 %v635, 15
        %v668 = vshrl.u32 %v636, 15
        %v669 = vshrl.u32 %v637, 15
        %v670 = vshrl.u32 %v638, 15
        %v671 = vshrl.u32 %v639, 15
        %v672 = vshrl.u32 %v640, 15
        %v673 = vshrl.u32 %v641, 15
        %v674 = vshrl.u32 %v642, 15
        %v675 = vshrl.u32 %v643, 15
        %v676 = vshrl.u32 %v644, 15
        %v677 = vshrl.u32 %v645, 15
        %v678 = vshrl.u32 %v646, 15
        %v679 = vshrl.u32 %v647, 15
        %v680 = vshrl.u32 %v648, 15
        %v681 = vshrl.u32 %v649, 15
        %v682 = vxor.u32 %v618, %v650
        %v683 = vxor.u32 %v619, %v651
        %v684 = vxor.u32 %v620, %v652
        %v685 = vxor.u32 %v621, %v653
        %v686 = vxor.u32 %v622, %v654
        %v687 = vxor.u32 %v623, %v655
        %v688 = vxor.u32 %v624, %v656
        %v689 = vxor.u32 %v625, %v657
        %v690 = vxor.u32 %v626, %v658
        %v691 = vxor.u32 %v627, %v659
        %v692 = vxor.u32 %v628, %v660
        %v693 = vxor.u32 %v629, %v661
        %v694 = vxor.u32 %v630, %v662
        %v695 = vxor.u32 %v631, %v663
        %v696 = vxor.u32 %v632, %v664
        %v697 = vxor.u32 %v633, %v665
        %v698 = vxor.u32 %v634, %v666
        %v699 = vxor.u32 %v635, %v667
        %v700 = vxor.u32 %v636, %v668
        %v701 = vxor.u32 %v637, %v669
        %v702 = vxor.u32 %v638, %v670
        %v703 = vxor.u32 %v639, %v671
        %v704 = vxor.u32 %v640, %v672
        %v705 = vxor.u32 %v641, %v673
        %v706 = vxor.u32 %v642, %v674
        %v707 = vxor.u32 %v643, %v675
        %v708 = vxor.u32 %v644, %v676
        %v709 = vxor.u32 %v645, %v677
        %v710 = vxor.u32 %v646, %v678
        %v711 = vxor.u32 %v647, %v679
        %v712 = vxor.u32 %v648, %v680
        %v713 = vxor.u32 %v649, %v681
        %v714 = vmul.u32 %v682, 2221713035
        %v715 = vmul.u32 %v683, 2221713035
        %v716 = vmul.u32 %v684, 2221713035
        %v717 = vmul.u32 %v685, 2221713035
        %v718 = vmul.u32 %v686, 2221713035
        %v719 = vmul.u32 %v687, 2221713035
        %v720 = vmul.u32 %v688, 2221713035
        %v721 = vmul.u32 %v689, 2221713035
        %v722 = vmul.u32 %v690, 2221713035
        %v723 = vmul.u32 %v691, 2221713035
        %v724 = vmul.u32 %v692, 2221713035
        %v725 = vmul.u32 %v693, 2221713035
        %v726 = vmul.u32 %v694, 2221713035
        %v727 = vmul.u32 %v695, 2221713035
        %v728 = vmul.u32 %v696, 2221713035
        %v729 = vmul.u32 %v697, 2221713035
        %v730 = vmul.u32 %v698, 2221713035
        %v731 = vmul.u32 %v699, 2221713035
        %v732 = vmul.u32 %v700, 2221713035
        %v733 = vmul.u32 %v701, 2221713035
        %v734 = vmul.u32 %v702, 2221713035
        %v735 = vmul.u32 %v703, 2221713035
        %v736 = vmul.u32 %v704, 2221713035
        %v737 = vmul.u32 %v705, 2221713035
        %v738 = vmul.u32 %v706, 2221713035
        %v739 = vmul.u32 %v707, 2221713035
        %v740 = vmul.u32 %v708, 2221713035
        %v741 = vmul.u32 %v709, 2221713035
        %v742 = vmul.u32 %v710, 2221713035
        %v743 = vmul.u32 %v711, 2221713035
        %v744 = vmul.u32 %v712, 2221713035
        %v745 = vmul.u32 %v713, 2221713035
        %v746 = vshrl.u32 %v714, 16
        %v747 = vshrl.u32 %v715, 16
        %v748 = vshrl.u32 %v716, 16
        %v749 = vshrl.u32 %v717, 16
        %v750 = vshrl.u32 %v718, 16
        %v751 = vshrl.u32 %v719, 16
        %v752 = vshrl.u32 %v720, 16
        %v753 = vshrl.u32 %v721, 16
        %v754 = vshrl.u32 %v722, 16
        %v755 = vshrl.u32 %v723, 16
        %v756 = vshrl.u32 %v724, 16
        %v757 = vshrl.u32 %v725, 16
        %v758 = vshrl.u32 %v726, 16
        %v759 = vshrl.u32 %v727, 16
        %v760 = vshrl.u32 %v728, 16
        %v761 = vshrl.u32 %v729, 16
        %v762 = vshrl.u32 %v730, 16
        %v763 = vshrl.u32 %v731, 16
        %v764 = vshrl.u32 %v732, 16
        %v765 = vshrl.u32 %v733, 16
        %v766 = vshrl.u32 %v734, 16
        %v767 = vshrl.u32 %v735, 16
        %v768 = vshrl.u32 %v736, 16
        %v769 = vshrl.u32 %v737, 16
        %v770 = vshrl.u32 %v738, 16
        %v771 = vshrl.u32 %v739, 16
        %v772 = vshrl.u32 %v740, 16
        %v773 = vshrl.u32 %v741, 16
        %v774 = vshrl.u32 %v742, 16
        %v775 = vshrl.u32 %v743, 16
        %v776 = vshrl.u32 %v744, 16
        %v777 = vshrl.u32 %v745, 16
        %v778 = vxor.u32 %v714, %v746
        %v779 = vxor.u32 %v715, %v747
        %v780 = vxor.u32 %v716, %v748
        %v781 = vxor.u32 %v717, %v749
        %v782 = vxor.u32 %v718, %v750
        %v783 = vxor.u32 %v719, %v751
        %v784 = vxor.u32 %v720, %v752
        %v785 = vxor.u32 %v721, %v753
        %v786 = vxor.u32 %v722, %v754
        %v787 = vxor.u32 %v723, %v755
        %v788 = vxor.u32 %v724, %v756
        %v789 = vxor.u32 %v725, %v757
        %v790 = vxor.u32 %v726, %v758
        %v791 = vxor.u32 %v727, %v759
        %v792 = vxor.u32 %v728, %v760
        %v793 = vxor.u32 %v729, %v761
        %v794 = vxor.u32 %v730, %v762
        %v795 = vxor.u32 %v731, %v763
        %v796 = vxor.u32 %v732, %v764
        %v797 = vxor.u32 %v733, %v765
        %v798 = vxor.u32 %v734, %v766
        %v799 = vxor.u32 %v735, %v767
        %v800 = vxor.u32 %v736, %v768
        %v801 = vxor.u32 %v737, %v769
        %v802 = vxor.u32 %v738, %v770
        %v803 = vxor.u32 %v739, %v771
        %v804 = vxor.u32 %v740, %v772
        %v805 = vxor.u32 %v741, %v773
        %v806 = vxor.u32 %v742, %v774
        %v807 = vxor.u32 %v743, %v775
        %v808 = vxor.u32 %v744, %v776
        %v809 = vxor.u32 %v745, %v777
        %v810 = vmul.u32 %v485, 2246822519
        %v811 = vmul.u32 %v486, 2246822519
        %v812 = vmul.u32 %v487, 2246822519
        %v813 = vmul.u32 %v488, 2246822519
        %s814 = sxor.u32 %s410, 1818371886
        %v815 = vstv %s814
        %v816 = vadd.s32 %v810, %v815
        %v817 = vadd.s32 %v811, %v815
        %v818 = vadd.s32 %v812, %v815
        %v819 = vadd.s32 %v813, %v815
        %v820 = vshrl.u32 %v816, 16
        %v821 = vshrl.u32 %v817, 16
        %v822 = vshrl.u32 %v818, 16
        %v823 = vshrl.u32 %v819, 16
        %v824 = vxor.u32 %v816, %v820
        %v825 = vxor.u32 %v817, %v821
        %v826 = vxor.u32 %v818, %v822
        %v827 = vxor.u32 %v819, %v823
        %v828 = vmul.u32 %v824, 2146121005
        %v829 = vmul.u32 %v825, 2146121005
        %v830 = vmul.u32 %v826, 2146121005
        %v831 = vmul.u32 %v827, 2146121005
        %v832 = vshrl.u32 %v828, 15
        %v833 = vshrl.u32 %v829, 15
        %v834 = vshrl.u32 %v830, 15
        %v835 = vshrl.u32 %v831, 15
        %v836 = vxor.u32 %v828, %v832
        %v837 = vxor.u32 %v829, %v833
        %v838 = vxor.u32 %v830, %v834
        %v839 = vxor.u32 %v831, %v835
        %v840 = vmul.u32 %v836, 2221713035
        %v841 = vmul.u32 %v837, 2221713035
        %v842 = vmul.u32 %v838, 2221713035
        %v843 = vmul.u32 %v839, 2221713035
        %v844 = vshrl.u32 %v840, 16
        %v845 = vshrl.u32 %v841, 16
        %v846 = vshrl.u32 %v842, 16
        %v847 = vshrl.u32 %v843, 16
        %v848 = vxor.u32 %v840, %v844
        %v849 = vxor.u32 %v841, %v845
        %v850 = vxor.u32 %v842, %v846
        %v851 = vxor.u32 %v843, %v847
        %v852 = vadd.s32 %v778, %v848
        %v853 = vadd.s32 %v778, %v849
        %v854 = vadd.s32 %v778, %v850
        %v855 = vadd.s32 %v778, %v851
        %v856 = vadd.s32 %v779, %v848
        %v857 = vadd.s32 %v779, %v849
        %v858 = vadd.s32 %v779, %v850
        %v859 = vadd.s32 %v779, %v851
        %v860 = vadd.s32 %v780, %v848
        %v861 = vadd.s32 %v780, %v849
        %v862 = vadd.s32 %v780, %v850
        %v863 = vadd.s32 %v780, %v851
        %v864 = vadd.s32 %v781, %v848
        %v865 = vadd.s32 %v781, %v849
        %v866 = vadd.s32 %v781, %v850
        %v867 = vadd.s32 %v781, %v851
        %v868 = vadd.s32 %v782, %v848
        %v869 = vadd.s32 %v782, %v849
        %v870 = vadd.s32 %v782, %v850
        %v871 = vadd.s32 %v782, %v851
        %v872 = vadd.s32 %v783, %v848
        %v873 = vadd.s32 %v783, %v849
        %v874 = vadd.s32 %v783, %v850
        %v875 = vadd.s32 %v783, %v851
        %v876 = vadd.s32 %v784, %v848
        %v877 = vadd.s32 %v784, %v849
        %v878 = vadd.s32 %v784, %v850
        %v879 = vadd.s32 %v784, %v851
        %v880 = vadd.s32 %v785, %v848
        %v881 = vadd.s32 %v785, %v849
        %v882 = vadd.s32 %v785, %v850
        %v883 = vadd.s32 %v785, %v851
        %v884 = vadd.s32 %v786, %v848
        %v885 = vadd.s32 %v786, %v849
        %v886 = vadd.s32 %v786, %v850
        %v887 = vadd.s32 %v786, %v851
        %v888 = vadd.s32 %v787, %v848
        %v889 = vadd.s32 %v787, %v849
        %v890 = vadd.s32 %v787, %v850
        %v891 = vadd.s32 %v787, %v851
        %v892 = vadd.s32 %v788, %v848
        %v893 = vadd.s32 %v788, %v849
        %v894 = vadd.s32 %v788, %v850
        %v895 = vadd.s32 %v788, %v851
        %v896 = vadd.s32 %v789, %v848
        %v897 = vadd.s32 %v789, %v849
        %v898 = vadd.s32 %v789, %v850
        %v899 = vadd.s32 %v789, %v851
        %v900 = vadd.s32 %v790, %v848
        %v901 = vadd.s32 %v790, %v849
        %v902 = vadd.s32 %v790, %v850
        %v903 = vadd.s32 %v790, %v851
        %v904 = vadd.s32 %v791, %v848
        %v905 = vadd.s32 %v791, %v849
        %v906 = vadd.s32 %v791, %v850
        %v907 = vadd.s32 %v791, %v851
        %v908 = vadd.s32 %v792, %v848
        %v909 = vadd.s32 %v792, %v849
        %v910 = vadd.s32 %v792, %v850
        %v911 = vadd.s32 %v792, %v851
        %v912 = vadd.s32 %v793, %v848
        %v913 = vadd.s32 %v793, %v849
        %v914 = vadd.s32 %v793, %v850
        %v915 = vadd.s32 %v793, %v851
        %v916 = vadd.s32 %v794, %v848
        %v917 = vadd.s32 %v794, %v849
        %v918 = vadd.s32 %v794, %v850
        %v919 = vadd.s32 %v794, %v851
        %v920 = vadd.s32 %v795, %v848
        %v921 = vadd.s32 %v795, %v849
        %v922 = vadd.s32 %v795, %v850
        %v923 = vadd.s32 %v795, %v851
        %v924 = vadd.s32 %v796, %v848
        %v925 = vadd.s32 %v796, %v849
        %v926 = vadd.s32 %v796, %v850
        %v927 = vadd.s32 %v796, %v851
        %v928 = vadd.s32 %v797, %v848
        %v929 = vadd.s32 %v797, %v849
        %v930 = vadd.s32 %v797, %v850
        %v931 = vadd.s32 %v797, %v851
        %v932 = vadd.s32 %v798, %v848
        %v933 = vadd.s32 %v798, %v849
        %v934 = vadd.s32 %v798, %v850
        %v935 = vadd.s32 %v798, %v851
        %v936 = vadd.s32 %v799, %v848
        %v937 = vadd.s32 %v799, %v849
        %v938 = vadd.s32 %v799, %v850
        %v939 = vadd.s32 %v799, %v851
        %v940 = vadd.s32 %v800, %v848
        %v941 = vadd.s32 %v800, %v849
        %v942 = vadd.s32 %v800, %v850
        %v943 = vadd.s32 %v800, %v851
        %v944 = vadd.s32 %v801, %v848
        %v945 = vadd.s32 %v801, %v849
        %v946 = vadd.s32 %v801, %v850
        %v947 = vadd.s32 %v801, %v851
        %v948 = vadd.s32 %v802, %v848
        %v949 = vadd.s32 %v802, %v849
        %v950 = vadd.s32 %v802, %v850
        %v951 = vadd.s32 %v802, %v851
        %v952 = vadd.s32 %v803, %v848
        %v953 = vadd.s32 %v803, %v849
        %v954 = vadd.s32 %v803, %v850
        %v955 = vadd.s32 %v803, %v851
        %v956 = vadd.s32 %v804, %v848
        %v957 = vadd.s32 %v804, %v849
        %v958 = vadd.s32 %v804, %v850
        %v959 = vadd.s32 %v804, %v851
        %v960 = vadd.s32 %v805, %v848
        %v961 = vadd.s32 %v805, %v849
        %v962 = vadd.s32 %v805, %v850
        %v963 = vadd.s32 %v805, %v851
        %v964 = vadd.s32 %v806, %v848
        %v965 = vadd.s32 %v806, %v849
        %v966 = vadd.s32 %v806, %v850
        %v967 = vadd.s32 %v806, %v851
        %v968 = vadd.s32 %v807, %v848
        %v969 = vadd.s32 %v807, %v849
        %v970 = vadd.s32 %v807, %v850
        %v971 = vadd.s32 %v807, %v851
        %v972 = vadd.s32 %v808, %v848
        %v973 = vadd.s32 %v808, %v849
        %v974 = vadd.s32 %v808, %v850
        %v975 = vadd.s32 %v808, %v851
        %v976 = vadd.s32 %v809, %v848
        %v977 = vadd.s32 %v809, %v849
        %v978 = vadd.s32 %v809, %v850
        %v979 = vadd.s32 %v809, %v851
        %v980 = vmul.u32 %v852, 2654435761
        %v981 = vmul.u32 %v853, 2654435761
        %v982 = vmul.u32 %v854, 2654435761
        %v983 = vmul.u32 %v855, 2654435761
        %v984 = vmul.u32 %v856, 2654435761
        %v985 = vmul.u32 %v857, 2654435761
        %v986 = vmul.u32 %v858, 2654435761
        %v987 = vmul.u32 %v859, 2654435761
        %v988 = vmul.u32 %v860, 2654435761
        %v989 = vmul.u32 %v861, 2654435761
        %v990 = vmul.u32 %v862, 2654435761
        %v991 = vmul.u32 %v863, 2654435761
        %v992 = vmul.u32 %v864, 2654435761
        %v993 = vmul.u32 %v865, 2654435761
        %v994 = vmul.u32 %v866, 2654435761
        %v995 = vmul.u32 %v867, 2654435761
        %v996 = vmul.u32 %v868, 2654435761
        %v997 = vmul.u32 %v869, 2654435761
        %v998 = vmul.u32 %v870, 2654435761
        %v999 = vmul.u32 %v871, 2654435761
        %v1000 = vmul.u32 %v872, 2654435761
        %v1001 = vmul.u32 %v873, 2654435761
        %v1002 = vmul.u32 %v874, 2654435761
        %v1003 = vmul.u32 %v875, 2654435761
        %v1004 = vmul.u32 %v876, 2654435761
        %v1005 = vmul.u32 %v877, 2654435761
        %v1006 = vmul.u32 %v878, 2654435761
        %v1007 = vmul.u32 %v879, 2654435761
        %v1008 = vmul.u32 %v880, 2654435761
        %v1009 = vmul.u32 %v881, 2654435761
        %v1010 = vmul.u32 %v882, 2654435761
        %v1011 = vmul.u32 %v883, 2654435761
        %v1012 = vmul.u32 %v884, 2654435761
        %v1013 = vmul.u32 %v885, 2654435761
        %v1014 = vmul.u32 %v886, 2654435761
        %v1015 = vmul.u32 %v887, 2654435761
        %v1016 = vmul.u32 %v888, 2654435761
        %v1017 = vmul.u32 %v889, 2654435761
        %v1018 = vmul.u32 %v890, 2654435761
        %v1019 = vmul.u32 %v891, 2654435761
        %v1020 = vmul.u32 %v892, 2654435761
        %v1021 = vmul.u32 %v893, 2654435761
        %v1022 = vmul.u32 %v894, 2654435761
        %v1023 = vmul.u32 %v895, 2654435761
        %v1024 = vmul.u32 %v896, 2654435761
        %v1025 = vmul.u32 %v897, 2654435761
        %v1026 = vmul.u32 %v898, 2654435761
        %v1027 = vmul.u32 %v899, 2654435761
        %v1028 = vmul.u32 %v900, 2654435761
        %v1029 = vmul.u32 %v901, 2654435761
        %v1030 = vmul.u32 %v902, 2654435761
        %v1031 = vmul.u32 %v903, 2654435761
        %v1032 = vmul.u32 %v904, 2654435761
        %v1033 = vmul.u32 %v905, 2654435761
        %v1034 = vmul.u32 %v906, 2654435761
        %v1035 = vmul.u32 %v907, 2654435761
        %v1036 = vmul.u32 %v908, 2654435761
        %v1037 = vmul.u32 %v909, 2654435761
        %v1038 = vmul.u32 %v910, 2654435761
        %v1039 = vmul.u32 %v911, 2654435761
        %v1040 = vmul.u32 %v912, 2654435761
        %v1041 = vmul.u32 %v913, 2654435761
        %v1042 = vmul.u32 %v914, 2654435761
        %v1043 = vmul.u32 %v915, 2654435761
        %v1044 = vmul.u32 %v916, 2654435761
        %v1045 = vmul.u32 %v917, 2654435761
        %v1046 = vmul.u32 %v918, 2654435761
        %v1047 = vmul.u32 %v919, 2654435761
        %v1048 = vmul.u32 %v920, 2654435761
        %v1049 = vmul.u32 %v921, 2654435761
        %v1050 = vmul.u32 %v922, 2654435761
        %v1051 = vmul.u32 %v923, 2654435761
        %v1052 = vmul.u32 %v924, 2654435761
        %v1053 = vmul.u32 %v925, 2654435761
        %v1054 = vmul.u32 %v926, 2654435761
        %v1055 = vmul.u32 %v927, 2654435761
        %v1056 = vmul.u32 %v928, 2654435761
        %v1057 = vmul.u32 %v929, 2654435761
        %v1058 = vmul.u32 %v930, 2654435761
        %v1059 = vmul.u32 %v931, 2654435761
        %v1060 = vmul.u32 %v932, 2654435761
        %v1061 = vmul.u32 %v933, 2654435761
        %v1062 = vmul.u32 %v934, 2654435761
        %v1063 = vmul.u32 %v935, 2654435761
        %v1064 = vmul.u32 %v936, 2654435761
        %v1065 = vmul.u32 %v937, 2654435761
        %v1066 = vmul.u32 %v938, 2654435761
        %v1067 = vmul.u32 %v939, 2654435761
        %v1068 = vmul.u32 %v940, 2654435761
        %v1069 = vmul.u32 %v941, 2654435761
        %v1070 = vmul.u32 %v942, 2654435761
        %v1071 = vmul.u32 %v943, 2654435761
        %v1072 = vmul.u32 %v944, 2654435761
        %v1073 = vmul.u32 %v945, 2654435761
        %v1074 = vmul.u32 %v946, 2654435761
        %v1075 = vmul.u32 %v947, 2654435761
        %v1076 = vmul.u32 %v948, 2654435761
        %v1077 = vmul.u32 %v949, 2654435761
        %v1078 = vmul.u32 %v950, 2654435761
        %v1079 = vmul.u32 %v951, 2654435761
        %v1080 = vmul.u32 %v952, 2654435761
        %v1081 = vmul.u32 %v953, 2654435761
        %v1082 = vmul.u32 %v954, 2654435761
        %v1083 = vmul.u32 %v955, 2654435761
        %v1084 = vmul.u32 %v956, 2654435761
        %v1085 = vmul.u32 %v957, 2654435761
        %v1086 = vmul.u32 %v958, 2654435761
        %v1087 = vmul.u32 %v959, 2654435761
        %v1088 = vmul.u32 %v960, 2654435761
        %v1089 = vmul.u32 %v961, 2654435761
        %v1090 = vmul.u32 %v962, 2654435761
        %v1091 = vmul.u32 %v963, 2654435761
        %v1092 = vmul.u32 %v964, 2654435761
        %v1093 = vmul.u32 %v965, 2654435761
        %v1094 = vmul.u32 %v966, 2654435761
        %v1095 = vmul.u32 %v967, 2654435761
        %v1096 = vmul.u32 %v968, 2654435761
        %v1097 = vmul.u32 %v969, 2654435761
        %v1098 = vmul.u32 %v970, 2654435761
        %v1099 = vmul.u32 %v971, 2654435761
        %v1100 = vmul.u32 %v972, 2654435761
        %v1101 = vmul.u32 %v973, 2654435761
        %v1102 = vmul.u32 %v974, 2654435761
        %v1103 = vmul.u32 %v975, 2654435761
        %v1104 = vmul.u32 %v976, 2654435761
        %v1105 = vmul.u32 %v977, 2654435761
        %v1106 = vmul.u32 %v978, 2654435761
        %v1107 = vmul.u32 %v979, 2654435761
        %v1108 = vshrl.u32 %v980, 16
        %v1109 = vshrl.u32 %v981, 16
        %v1110 = vshrl.u32 %v982, 16
        %v1111 = vshrl.u32 %v983, 16
        %v1112 = vshrl.u32 %v984, 16
        %v1113 = vshrl.u32 %v985, 16
        %v1114 = vshrl.u32 %v986, 16
        %v1115 = vshrl.u32 %v987, 16
        %v1116 = vshrl.u32 %v988, 16
        %v1117 = vshrl.u32 %v989, 16
        %v1118 = vshrl.u32 %v990, 16
        %v1119 = vshrl.u32 %v991, 16
        %v1120 = vshrl.u32 %v992, 16
        %v1121 = vshrl.u32 %v993, 16
        %v1122 = vshrl.u32 %v994, 16
        %v1123 = vshrl.u32 %v995, 16
        %v1124 = vshrl.u32 %v996, 16
        %v1125 = vshrl.u32 %v997, 16
        %v1126 = vshrl.u32 %v998, 16
        %v1127 = vshrl.u32 %v999, 16
        %v1128 = vshrl.u32 %v1000, 16
        %v1129 = vshrl.u32 %v1001, 16
        %v1130 = vshrl.u32 %v1002, 16
        %v1131 = vshrl.u32 %v1003, 16
        %v1132 = vshrl.u32 %v1004, 16
        %v1133 = vshrl.u32 %v1005, 16
        %v1134 = vshrl.u32 %v1006, 16
        %v1135 = vshrl.u32 %v1007, 16
        %v1136 = vshrl.u32 %v1008, 16
        %v1137 = vshrl.u32 %v1009, 16
        %v1138 = vshrl.u32 %v1010, 16
        %v1139 = vshrl.u32 %v1011, 16
        %v1140 = vshrl.u32 %v1012, 16
        %v1141 = vshrl.u32 %v1013, 16
        %v1142 = vshrl.u32 %v1014, 16
        %v1143 = vshrl.u32 %v1015, 16
        %v1144 = vshrl.u32 %v1016, 16
        %v1145 = vshrl.u32 %v1017, 16
        %v1146 = vshrl.u32 %v1018, 16
        %v1147 = vshrl.u32 %v1019, 16
        %v1148 = vshrl.u32 %v1020, 16
        %v1149 = vshrl.u32 %v1021, 16
        %v1150 = vshrl.u32 %v1022, 16
        %v1151 = vshrl.u32 %v1023, 16
        %v1152 = vshrl.u32 %v1024, 16
        %v1153 = vshrl.u32 %v1025, 16
        %v1154 = vshrl.u32 %v1026, 16
        %v1155 = vshrl.u32 %v1027, 16
        %v1156 = vshrl.u32 %v1028, 16
        %v1157 = vshrl.u32 %v1029, 16
        %v1158 = vshrl.u32 %v1030, 16
        %v1159 = vshrl.u32 %v1031, 16
        %v1160 = vshrl.u32 %v1032, 16
        %v1161 = vshrl.u32 %v1033, 16
        %v1162 = vshrl.u32 %v1034, 16
        %v1163 = vshrl.u32 %v1035, 16
        %v1164 = vshrl.u32 %v1036, 16
        %v1165 = vshrl.u32 %v1037, 16
        %v1166 = vshrl.u32 %v1038, 16
        %v1167 = vshrl.u32 %v1039, 16
        %v1168 = vshrl.u32 %v1040, 16
        %v1169 = vshrl.u32 %v1041, 16
        %v1170 = vshrl.u32 %v1042, 16
        %v1171 = vshrl.u32 %v1043, 16
        %v1172 = vshrl.u32 %v1044, 16
        %v1173 = vshrl.u32 %v1045, 16
        %v1174 = vshrl.u32 %v1046, 16
        %v1175 = vshrl.u32 %v1047, 16
        %v1176 = vshrl.u32 %v1048, 16
        %v1177 = vshrl.u32 %v1049, 16
        %v1178 = vshrl.u32 %v1050, 16
        %v1179 = vshrl.u32 %v1051, 16
        %v1180 = vshrl.u32 %v1052, 16
        %v1181 = vshrl.u32 %v1053, 16
        %v1182 = vshrl.u32 %v1054, 16
        %v1183 = vshrl.u32 %v1055, 16
        %v1184 = vshrl.u32 %v1056, 16
        %v1185 = vshrl.u32 %v1057, 16
        %v1186 = vshrl.u32 %v1058, 16
        %v1187 = vshrl.u32 %v1059, 16
        %v1188 = vshrl.u32 %v1060, 16
        %v1189 = vshrl.u32 %v1061, 16
        %v1190 = vshrl.u32 %v1062, 16
        %v1191 = vshrl.u32 %v1063, 16
        %v1192 = vshrl.u32 %v1064, 16
        %v1193 = vshrl.u32 %v1065, 16
        %v1194 = vshrl.u32 %v1066, 16
        %v1195 = vshrl.u32 %v1067, 16
        %v1196 = vshrl.u32 %v1068, 16
        %v1197 = vshrl.u32 %v1069, 16
        %v1198 = vshrl.u32 %v1070, 16
        %v1199 = vshrl.u32 %v1071, 16
        %v1200 = vshrl.u32 %v1072, 16
        %v1201 = vshrl.u32 %v1073, 16
        %v1202 = vshrl.u32 %v1074, 16
        %v1203 = vshrl.u32 %v1075, 16
        %v1204 = vshrl.u32 %v1076, 16
        %v1205 = vshrl.u32 %v1077, 16
        %v1206 = vshrl.u32 %v1078, 16
        %v1207 = vshrl.u32 %v1079, 16
        %v1208 = vshrl.u32 %v1080, 16
        %v1209 = vshrl.u32 %v1081, 16
        %v1210 = vshrl.u32 %v1082, 16
        %v1211 = vshrl.u32 %v1083, 16
        %v1212 = vshrl.u32 %v1084, 16
        %v1213 = vshrl.u32 %v1085, 16
        %v1214 = vshrl.u32 %v1086, 16
        %v1215 = vshrl.u32 %v1087, 16
        %v1216 = vshrl.u32 %v1088, 16
        %v1217 = vshrl.u32 %v1089, 16
        %v1218 = vshrl.u32 %v1090, 16
        %v1219 = vshrl.u32 %v1091, 16
        %v1220 = vshrl.u32 %v1092, 16
        %v1221 = vshrl.u32 %v1093, 16
        %v1222 = vshrl.u32 %v1094, 16
        %v1223 = vshrl.u32 %v1095, 16
        %v1224 = vshrl.u32 %v1096, 16
        %v1225 = vshrl.u32 %v1097, 16
        %v1226 = vshrl.u32 %v1098, 16
        %v1227 = vshrl.u32 %v1099, 16
        %v1228 = vshrl.u32 %v1100, 16
        %v1229 = vshrl.u32 %v1101, 16
        %v1230 = vshrl.u32 %v1102, 16
        %v1231 = vshrl.u32 %v1103, 16
        %v1232 = vshrl.u32 %v1104, 16
        %v1233 = vshrl.u32 %v1105, 16
        %v1234 = vshrl.u32 %v1106, 16
        %v1235 = vshrl.u32 %v1107, 16
        %v1236 = vxor.u32 %v980, %v1108
        %v1237 = vxor.u32 %v981, %v1109
        %v1238 = vxor.u32 %v982, %v1110
        %v1239 = vxor.u32 %v983, %v1111
        %v1240 = vxor.u32 %v984, %v1112
        %v1241 = vxor.u32 %v985, %v1113
        %v1242 = vxor.u32 %v986, %v1114
        %v1243 = vxor.u32 %v987, %v1115
        %v1244 = vxor.u32 %v988, %v1116
        %v1245 = vxor.u32 %v989, %v1117
        %v1246 = vxor.u32 %v990, %v1118
        %v1247 = vxor.u32 %v991, %v1119
        %v1248 = vxor.u32 %v992, %v1120
        %v1249 = vxor.u32 %v993, %v1121
        %v1250 = vxor.u32 %v994, %v1122
        %v1251 = vxor.u32 %v995, %v1123
        %v1252 = vxor.u32 %v996, %v1124
        %v1253 = vxor.u32 %v997, %v1125
        %v1254 = vxor.u32 %v998, %v1126
        %v1255 = vxor.u32 %v999, %v1127
        %v1256 = vxor.u32 %v1000, %v1128
        %v1257 = vxor.u32 %v1001, %v1129
        %v1258 = vxor.u32 %v1002, %v1130
        %v1259 = vxor.u32 %v1003, %v1131
        %v1260 = vxor.u32 %v1004, %v1132
        %v1261 = vxor.u32 %v1005, %v1133
        %v1262 = vxor.u32 %v1006, %v1134
        %v1263 = vxor.u32 %v1007, %v1135
        %v1264 = vxor.u32 %v1008, %v1136
        %v1265 = vxor.u32 %v1009, %v1137
        %v1266 = vxor.u32 %v1010, %v1138
        %v1267 = vxor.u32 %v1011, %v1139
        %v1268 = vxor.u32 %v1012, %v1140
        %v1269 = vxor.u32 %v1013, %v1141
        %v1270 = vxor.u32 %v1014, %v1142
        %v1271 = vxor.u32 %v1015, %v1143
        %v1272 = vxor.u32 %v1016, %v1144
        %v1273 = vxor.u32 %v1017, %v1145
        %v1274 = vxor.u32 %v1018, %v1146
        %v1275 = vxor.u32 %v1019, %v1147
        %v1276 = vxor.u32 %v1020, %v1148
        %v1277 = vxor.u32 %v1021, %v1149
        %v1278 = vxor.u32 %v1022, %v1150
        %v1279 = vxor.u32 %v1023, %v1151
        %v1280 = vxor.u32 %v1024, %v1152
        %v1281 = vxor.u32 %v1025, %v1153
        %v1282 = vxor.u32 %v1026, %v1154
        %v1283 = vxor.u32 %v1027, %v1155
        %v1284 = vxor.u32 %v1028, %v1156
        %v1285 = vxor.u32 %v1029, %v1157
        %v1286 = vxor.u32 %v1030, %v1158
        %v1287 = vxor.u32 %v1031, %v1159
        %v1288 = vxor.u32 %v1032, %v1160
        %v1289 = vxor.u32 %v1033, %v1161
        %v1290 = vxor.u32 %v1034, %v1162
        %v1291 = vxor.u32 %v1035, %v1163
        %v1292 = vxor.u32 %v1036, %v1164
        %v1293 = vxor.u32 %v1037, %v1165
        %v1294 = vxor.u32 %v1038, %v1166
        %v1295 = vxor.u32 %v1039, %v1167
        %v1296 = vxor.u32 %v1040, %v1168
        %v1297 = vxor.u32 %v1041, %v1169
        %v1298 = vxor.u32 %v1042, %v1170
        %v1299 = vxor.u32 %v1043, %v1171
        %v1300 = vxor.u32 %v1044, %v1172
        %v1301 = vxor.u32 %v1045, %v1173
        %v1302 = vxor.u32 %v1046, %v1174
        %v1303 = vxor.u32 %v1047, %v1175
        %v1304 = vxor.u32 %v1048, %v1176
        %v1305 = vxor.u32 %v1049, %v1177
        %v1306 = vxor.u32 %v1050, %v1178
        %v1307 = vxor.u32 %v1051, %v1179
        %v1308 = vxor.u32 %v1052, %v1180
        %v1309 = vxor.u32 %v1053, %v1181
        %v1310 = vxor.u32 %v1054, %v1182
        %v1311 = vxor.u32 %v1055, %v1183
        %v1312 = vxor.u32 %v1056, %v1184
        %v1313 = vxor.u32 %v1057, %v1185
        %v1314 = vxor.u32 %v1058, %v1186
        %v1315 = vxor.u32 %v1059, %v1187
        %v1316 = vxor.u32 %v1060, %v1188
        %v1317 = vxor.u32 %v1061, %v1189
        %v1318 = vxor.u32 %v1062, %v1190
        %v1319 = vxor.u32 %v1063, %v1191
        %v1320 = vxor.u32 %v1064, %v1192
        %v1321 = vxor.u32 %v1065, %v1193
        %v1322 = vxor.u32 %v1066, %v1194
        %v1323 = vxor.u32 %v1067, %v1195
        %v1324 = vxor.u32 %v1068, %v1196
        %v1325 = vxor.u32 %v1069, %v1197
        %v1326 = vxor.u32 %v1070, %v1198
        %v1327 = vxor.u32 %v1071, %v1199
        %v1328 = vxor.u32 %v1072, %v1200
        %v1329 = vxor.u32 %v1073, %v1201
        %v1330 = vxor.u32 %v1074, %v1202
        %v1331 = vxor.u32 %v1075, %v1203
        %v1332 = vxor.u32 %v1076, %v1204
        %v1333 = vxor.u32 %v1077, %v1205
        %v1334 = vxor.u32 %v1078, %v1206
        %v1335 = vxor.u32 %v1079, %v1207
        %v1336 = vxor.u32 %v1080, %v1208
        %v1337 = vxor.u32 %v1081, %v1209
        %v1338 = vxor.u32 %v1082, %v1210
        %v1339 = vxor.u32 %v1083, %v1211
        %v1340 = vxor.u32 %v1084, %v1212
        %v1341 = vxor.u32 %v1085, %v1213
        %v1342 = vxor.u32 %v1086, %v1214
        %v1343 = vxor.u32 %v1087, %v1215
        %v1344 = vxor.u32 %v1088, %v1216
        %v1345 = vxor.u32 %v1089, %v1217
        %v1346 = vxor.u32 %v1090, %v1218
        %v1347 = vxor.u32 %v1091, %v1219
        %v1348 = vxor.u32 %v1092, %v1220
        %v1349 = vxor.u32 %v1093, %v1221
        %v1350 = vxor.u32 %v1094, %v1222
        %v1351 = vxor.u32 %v1095, %v1223
        %v1352 = vxor.u32 %v1096, %v1224
        %v1353 = vxor.u32 %v1097, %v1225
        %v1354 = vxor.u32 %v1098, %v1226
        %v1355 = vxor.u32 %v1099, %v1227
        %v1356 = vxor.u32 %v1100, %v1228
        %v1357 = vxor.u32 %v1101, %v1229
        %v1358 = vxor.u32 %v1102, %v1230
        %v1359 = vxor.u32 %v1103, %v1231
        %v1360 = vxor.u32 %v1104, %v1232
        %v1361 = vxor.u32 %v1105, %v1233
        %v1362 = vxor.u32 %v1106, %v1234
        %v1363 = vxor.u32 %v1107, %v1235
        %v1364 = vshrl.u32 %v1236, 1
        %v1365 = vshrl.u32 %v1237, 1
        %v1366 = vshrl.u32 %v1238, 1
        %v1367 = vshrl.u32 %v1239, 1
        %v1368 = vshrl.u32 %v1240, 1
        %v1369 = vshrl.u32 %v1241, 1
        %v1370 = vshrl.u32 %v1242, 1
        %v1371 = vshrl.u32 %v1243, 1
        %v1372 = vshrl.u32 %v1244, 1
        %v1373 = vshrl.u32 %v1245, 1
        %v1374 = vshrl.u32 %v1246, 1
        %v1375 = vshrl.u32 %v1247, 1
        %v1376 = vshrl.u32 %v1248, 1
        %v1377 = vshrl.u32 %v1249, 1
        %v1378 = vshrl.u32 %v1250, 1
        %v1379 = vshrl.u32 %v1251, 1
        %v1380 = vshrl.u32 %v1252, 1
        %v1381 = vshrl.u32 %v1253, 1
        %v1382 = vshrl.u32 %v1254, 1
        %v1383 = vshrl.u32 %v1255, 1
        %v1384 = vshrl.u32 %v1256, 1
        %v1385 = vshrl.u32 %v1257, 1
        %v1386 = vshrl.u32 %v1258, 1
        %v1387 = vshrl.u32 %v1259, 1
        %v1388 = vshrl.u32 %v1260, 1
        %v1389 = vshrl.u32 %v1261, 1
        %v1390 = vshrl.u32 %v1262, 1
        %v1391 = vshrl.u32 %v1263, 1
        %v1392 = vshrl.u32 %v1264, 1
        %v1393 = vshrl.u32 %v1265, 1
        %v1394 = vshrl.u32 %v1266, 1
        %v1395 = vshrl.u32 %v1267, 1
        %v1396 = vshrl.u32 %v1268, 1
        %v1397 = vshrl.u32 %v1269, 1
        %v1398 = vshrl.u32 %v1270, 1
        %v1399 = vshrl.u32 %v1271, 1
        %v1400 = vshrl.u32 %v1272, 1
        %v1401 = vshrl.u32 %v1273, 1
        %v1402 = vshrl.u32 %v1274, 1
        %v1403 = vshrl.u32 %v1275, 1
        %v1404 = vshrl.u32 %v1276, 1
        %v1405 = vshrl.u32 %v1277, 1
        %v1406 = vshrl.u32 %v1278, 1
        %v1407 = vshrl.u32 %v1279, 1
        %v1408 = vshrl.u32 %v1280, 1
        %v1409 = vshrl.u32 %v1281, 1
        %v1410 = vshrl.u32 %v1282, 1
        %v1411 = vshrl.u32 %v1283, 1
        %v1412 = vshrl.u32 %v1284, 1
        %v1413 = vshrl.u32 %v1285, 1
        %v1414 = vshrl.u32 %v1286, 1
        %v1415 = vshrl.u32 %v1287, 1
        %v1416 = vshrl.u32 %v1288, 1
        %v1417 = vshrl.u32 %v1289, 1
        %v1418 = vshrl.u32 %v1290, 1
        %v1419 = vshrl.u32 %v1291, 1
        %v1420 = vshrl.u32 %v1292, 1
        %v1421 = vshrl.u32 %v1293, 1
        %v1422 = vshrl.u32 %v1294, 1
        %v1423 = vshrl.u32 %v1295, 1
        %v1424 = vshrl.u32 %v1296, 1
        %v1425 = vshrl.u32 %v1297, 1
        %v1426 = vshrl.u32 %v1298, 1
        %v1427 = vshrl.u32 %v1299, 1
        %v1428 = vshrl.u32 %v1300, 1
        %v1429 = vshrl.u32 %v1301, 1
        %v1430 = vshrl.u32 %v1302, 1
        %v1431 = vshrl.u32 %v1303, 1
        %v1432 = vshrl.u32 %v1304, 1
        %v1433 = vshrl.u32 %v1305, 1
        %v1434 = vshrl.u32 %v1306, 1
        %v1435 = vshrl.u32 %v1307, 1
        %v1436 = vshrl.u32 %v1308, 1
        %v1437 = vshrl.u32 %v1309, 1
        %v1438 = vshrl.u32 %v1310, 1
        %v1439 = vshrl.u32 %v1311, 1
        %v1440 = vshrl.u32 %v1312, 1
        %v1441 = vshrl.u32 %v1313, 1
        %v1442 = vshrl.u32 %v1314, 1
        %v1443 = vshrl.u32 %v1315, 1
        %v1444 = vshrl.u32 %v1316, 1
        %v1445 = vshrl.u32 %v1317, 1
        %v1446 = vshrl.u32 %v1318, 1
        %v1447 = vshrl.u32 %v1319, 1
        %v1448 = vshrl.u32 %v1320, 1
        %v1449 = vshrl.u32 %v1321, 1
        %v1450 = vshrl.u32 %v1322, 1
        %v1451 = vshrl.u32 %v1323, 1
        %v1452 = vshrl.u32 %v1324, 1
        %v1453 = vshrl.u32 %v1325, 1
        %v1454 = vshrl.u32 %v1326, 1
        %v1455 = vshrl.u32 %v1327, 1
        %v1456 = vshrl.u32 %v1328, 1
        %v1457 = vshrl.u32 %v1329, 1
        %v1458 = vshrl.u32 %v1330, 1
        %v1459 = vshrl.u32 %v1331, 1
        %v1460 = vshrl.u32 %v1332, 1
        %v1461 = vshrl.u32 %v1333, 1
        %v1462 = vshrl.u32 %v1334, 1
        %v1463 = vshrl.u32 %v1335, 1
        %v1464 = vshrl.u32 %v1336, 1
        %v1465 = vshrl.u32 %v1337, 1
        %v1466 = vshrl.u32 %v1338, 1
        %v1467 = vshrl.u32 %v1339, 1
        %v1468 = vshrl.u32 %v1340, 1
        %v1469 = vshrl.u32 %v1341, 1
        %v1470 = vshrl.u32 %v1342, 1
        %v1471 = vshrl.u32 %v1343, 1
        %v1472 = vshrl.u32 %v1344, 1
        %v1473 = vshrl.u32 %v1345, 1
        %v1474 = vshrl.u32 %v1346, 1
        %v1475 = vshrl.u32 %v1347, 1
        %v1476 = vshrl.u32 %v1348, 1
        %v1477 = vshrl.u32 %v1349, 1
        %v1478 = vshrl.u32 %v1350, 1
        %v1479 = vshrl.u32 %v1351, 1
        %v1480 = vshrl.u32 %v1352, 1
        %v1481 = vshrl.u32 %v1353, 1
        %v1482 = vshrl.u32 %v1354, 1
        %v1483 = vshrl.u32 %v1355, 1
        %v1484 = vshrl.u32 %v1356, 1
        %v1485 = vshrl.u32 %v1357, 1
        %v1486 = vshrl.u32 %v1358, 1
        %v1487 = vshrl.u32 %v1359, 1
        %v1488 = vshrl.u32 %v1360, 1
        %v1489 = vshrl.u32 %v1361, 1
        %v1490 = vshrl.u32 %v1362, 1
        %v1491 = vshrl.u32 %v1363, 1
        %s1492 = sld [smem:[#allocation4]]
        %v1493 = vstv %s1492
        %vm1494 = vcmp.lt.s32.totalorder %v1364, %v1493
        %vm1495 = vcmp.lt.s32.totalorder %v1365, %v1493
        %vm1496 = vcmp.lt.s32.totalorder %v1366, %v1493
        %vm1497 = vcmp.lt.s32.totalorder %v1367, %v1493
        %vm1498 = vcmp.lt.s32.totalorder %v1368, %v1493
        %vm1499 = vcmp.lt.s32.totalorder %v1369, %v1493
        %vm1500 = vcmp.lt.s32.totalorder %v1370, %v1493
        %vm1501 = vcmp.lt.s32.totalorder %v1371, %v1493
        %vm1502 = vcmp.lt.s32.totalorder %v1372, %v1493
        %vm1503 = vcmp.lt.s32.totalorder %v1373, %v1493
        %vm1504 = vcmp.lt.s32.totalorder %v1374, %v1493
        %vm1505 = vcmp.lt.s32.totalorder %v1375, %v1493
        %vm1506 = vcmp.lt.s32.totalorder %v1376, %v1493
        %vm1507 = vcmp.lt.s32.totalorder %v1377, %v1493
        %vm1508 = vcmp.lt.s32.totalorder %v1378, %v1493
        %vm1509 = vcmp.lt.s32.totalorder %v1379, %v1493
        %vm1510 = vcmp.lt.s32.totalorder %v1380, %v1493
        %vm1511 = vcmp.lt.s32.totalorder %v1381, %v1493
        %vm1512 = vcmp.lt.s32.totalorder %v1382, %v1493
        %vm1513 = vcmp.lt.s32.totalorder %v1383, %v1493
        %vm1514 = vcmp.lt.s32.totalorder %v1384, %v1493
        %vm1515 = vcmp.lt.s32.totalorder %v1385, %v1493
        %vm1516 = vcmp.lt.s32.totalorder %v1386, %v1493
        %vm1517 = vcmp.lt.s32.totalorder %v1387, %v1493
        %vm1518 = vcmp.lt.s32.totalorder %v1388, %v1493
        %vm1519 = vcmp.lt.s32.totalorder %v1389, %v1493
        %vm1520 = vcmp.lt.s32.totalorder %v1390, %v1493
        %vm1521 = vcmp.lt.s32.totalorder %v1391, %v1493
        %vm1522 = vcmp.lt.s32.totalorder %v1392, %v1493
        %vm1523 = vcmp.lt.s32.totalorder %v1393, %v1493
        %vm1524 = vcmp.lt.s32.totalorder %v1394, %v1493
        %vm1525 = vcmp.lt.s32.totalorder %v1395, %v1493
        %vm1526 = vcmp.lt.s32.totalorder %v1396, %v1493
        %vm1527 = vcmp.lt.s32.totalorder %v1397, %v1493
        %vm1528 = vcmp.lt.s32.totalorder %v1398, %v1493
        %vm1529 = vcmp.lt.s32.totalorder %v1399, %v1493
        %vm1530 = vcmp.lt.s32.totalorder %v1400, %v1493
        %vm1531 = vcmp.lt.s32.totalorder %v1401, %v1493
        %vm1532 = vcmp.lt.s32.totalorder %v1402, %v1493
        %vm1533 = vcmp.lt.s32.totalorder %v1403, %v1493
        %vm1534 = vcmp.lt.s32.totalorder %v1404, %v1493
        %vm1535 = vcmp.lt.s32.totalorder %v1405, %v1493
        %vm1536 = vcmp.lt.s32.totalorder %v1406, %v1493
        %vm1537 = vcmp.lt.s32.totalorder %v1407, %v1493
        %vm1538 = vcmp.lt.s32.totalorder %v1408, %v1493
        %vm1539 = vcmp.lt.s32.totalorder %v1409, %v1493
        %vm1540 = vcmp.lt.s32.totalorder %v1410, %v1493
        %vm1541 = vcmp.lt.s32.totalorder %v1411, %v1493
        %vm1542 = vcmp.lt.s32.totalorder %v1412, %v1493
        %vm1543 = vcmp.lt.s32.totalorder %v1413, %v1493
        %vm1544 = vcmp.lt.s32.totalorder %v1414, %v1493
        %vm1545 = vcmp.lt.s32.totalorder %v1415, %v1493
        %vm1546 = vcmp.lt.s32.totalorder %v1416, %v1493
        %vm1547 = vcmp.lt.s32.totalorder %v1417, %v1493
        %vm1548 = vcmp.lt.s32.totalorder %v1418, %v1493
        %vm1549 = vcmp.lt.s32.totalorder %v1419, %v1493
        %vm1550 = vcmp.lt.s32.totalorder %v1420, %v1493
        %vm1551 = vcmp.lt.s32.totalorder %v1421, %v1493
        %vm1552 = vcmp.lt.s32.totalorder %v1422, %v1493
        %vm1553 = vcmp.lt.s32.totalorder %v1423, %v1493
        %vm1554 = vcmp.lt.s32.totalorder %v1424, %v1493
        %vm1555 = vcmp.lt.s32.totalorder %v1425, %v1493
        %vm1556 = vcmp.lt.s32.totalorder %v1426, %v1493
        %vm1557 = vcmp.lt.s32.totalorder %v1427, %v1493
        %vm1558 = vcmp.lt.s32.totalorder %v1428, %v1493
        %vm1559 = vcmp.lt.s32.totalorder %v1429, %v1493
        %vm1560 = vcmp.lt.s32.totalorder %v1430, %v1493
        %vm1561 = vcmp.lt.s32.totalorder %v1431, %v1493
        %vm1562 = vcmp.lt.s32.totalorder %v1432, %v1493
        %vm1563 = vcmp.lt.s32.totalorder %v1433, %v1493
        %vm1564 = vcmp.lt.s32.totalorder %v1434, %v1493
        %vm1565 = vcmp.lt.s32.totalorder %v1435, %v1493
        %vm1566 = vcmp.lt.s32.totalorder %v1436, %v1493
        %vm1567 = vcmp.lt.s32.totalorder %v1437, %v1493
        %vm1568 = vcmp.lt.s32.totalorder %v1438, %v1493
        %vm1569 = vcmp.lt.s32.totalorder %v1439, %v1493
        %vm1570 = vcmp.lt.s32.totalorder %v1440, %v1493
        %vm1571 = vcmp.lt.s32.totalorder %v1441, %v1493
        %vm1572 = vcmp.lt.s32.totalorder %v1442, %v1493
        %vm1573 = vcmp.lt.s32.totalorder %v1443, %v1493
        %vm1574 = vcmp.lt.s32.totalorder %v1444, %v1493
        %vm1575 = vcmp.lt.s32.totalorder %v1445, %v1493
        %vm1576 = vcmp.lt.s32.totalorder %v1446, %v1493
        %vm1577 = vcmp.lt.s32.totalorder %v1447, %v1493
        %vm1578 = vcmp.lt.s32.totalorder %v1448, %v1493
        %vm1579 = vcmp.lt.s32.totalorder %v1449, %v1493
        %vm1580 = vcmp.lt.s32.totalorder %v1450, %v1493
        %vm1581 = vcmp.lt.s32.totalorder %v1451, %v1493
        %vm1582 = vcmp.lt.s32.totalorder %v1452, %v1493
        %vm1583 = vcmp.lt.s32.totalorder %v1453, %v1493
        %vm1584 = vcmp.lt.s32.totalorder %v1454, %v1493
        %vm1585 = vcmp.lt.s32.totalorder %v1455, %v1493
        %vm1586 = vcmp.lt.s32.totalorder %v1456, %v1493
        %vm1587 = vcmp.lt.s32.totalorder %v1457, %v1493
        %vm1588 = vcmp.lt.s32.totalorder %v1458, %v1493
        %vm1589 = vcmp.lt.s32.totalorder %v1459, %v1493
        %vm1590 = vcmp.lt.s32.totalorder %v1460, %v1493
        %vm1591 = vcmp.lt.s32.totalorder %v1461, %v1493
        %vm1592 = vcmp.lt.s32.totalorder %v1462, %v1493
        %vm1593 = vcmp.lt.s32.totalorder %v1463, %v1493
        %vm1594 = vcmp.lt.s32.totalorder %v1464, %v1493
        %vm1595 = vcmp.lt.s32.totalorder %v1465, %v1493
        %vm1596 = vcmp.lt.s32.totalorder %v1466, %v1493
        %vm1597 = vcmp.lt.s32.totalorder %v1467, %v1493
        %vm1598 = vcmp.lt.s32.totalorder %v1468, %v1493
        %vm1599 = vcmp.lt.s32.totalorder %v1469, %v1493
        %vm1600 = vcmp.lt.s32.totalorder %v1470, %v1493
        %vm1601 = vcmp.lt.s32.totalorder %v1471, %v1493
        %vm1602 = vcmp.lt.s32.totalorder %v1472, %v1493
        %vm1603 = vcmp.lt.s32.totalorder %v1473, %v1493
        %vm1604 = vcmp.lt.s32.totalorder %v1474, %v1493
        %vm1605 = vcmp.lt.s32.totalorder %v1475, %v1493
        %vm1606 = vcmp.lt.s32.totalorder %v1476, %v1493
        %vm1607 = vcmp.lt.s32.totalorder %v1477, %v1493
        %vm1608 = vcmp.lt.s32.totalorder %v1478, %v1493
        %vm1609 = vcmp.lt.s32.totalorder %v1479, %v1493
        %vm1610 = vcmp.lt.s32.totalorder %v1480, %v1493
        %vm1611 = vcmp.lt.s32.totalorder %v1481, %v1493
        %vm1612 = vcmp.lt.s32.totalorder %v1482, %v1493
        %vm1613 = vcmp.lt.s32.totalorder %v1483, %v1493
        %vm1614 = vcmp.lt.s32.totalorder %v1484, %v1493
        %vm1615 = vcmp.lt.s32.totalorder %v1485, %v1493
        %vm1616 = vcmp.lt.s32.totalorder %v1486, %v1493
        %vm1617 = vcmp.lt.s32.totalorder %v1487, %v1493
        %vm1618 = vcmp.lt.s32.totalorder %v1488, %v1493
        %vm1619 = vcmp.lt.s32.totalorder %v1489, %v1493
        %vm1620 = vcmp.lt.s32.totalorder %v1490, %v1493
        %vm1621 = vcmp.lt.s32.totalorder %v1491, %v1493
        %v1622 = vld [vmem:[%s353] sm:$0xff]
        %v1623 = vld [vmem:[%s353 + $0x8] sm:$0xff]
        %v1624 = vld [vmem:[%s353 + $0x10] sm:$0xff]
        %v1625 = vld [vmem:[%s353 + $0x18] sm:$0xff]
        %v1626 = vld [vmem:[%s353 + $0x20] sm:$0xff]
        %v1627 = vld [vmem:[%s353 + $0x28] sm:$0xff]
        %v1628 = vld [vmem:[%s353 + $0x30] sm:$0xff]
        %v1629 = vld [vmem:[%s353 + $0x38] sm:$0xff]
        %v1630 = vld [vmem:[%s353 + $0x40] sm:$0xff]
        %v1631 = vld [vmem:[%s353 + $0x48] sm:$0xff]
        %v1632 = vld [vmem:[%s353 + $0x50] sm:$0xff]
        %v1633 = vld [vmem:[%s353 + $0x58] sm:$0xff]
        %v1634 = vld [vmem:[%s353 + $0x60] sm:$0xff]
        %v1635 = vld [vmem:[%s353 + $0x68] sm:$0xff]
        %v1636 = vld [vmem:[%s353 + $0x70] sm:$0xff]
        %v1637 = vld [vmem:[%s353 + $0x78] sm:$0xff]
        %v1638 = vld [vmem:[%s353 + $0x80] sm:$0xff]
        %v1639 = vld [vmem:[%s353 + $0x88] sm:$0xff]
        %v1640 = vld [vmem:[%s353 + $0x90] sm:$0xff]
        %v1641 = vld [vmem:[%s353 + $0x98] sm:$0xff]
        %v1642 = vld [vmem:[%s353 + $0xa0] sm:$0xff]
        %v1643 = vld [vmem:[%s353 + $0xa8] sm:$0xff]
        %v1644 = vld [vmem:[%s353 + $0xb0] sm:$0xff]
        %v1645 = vld [vmem:[%s353 + $0xb8] sm:$0xff]
        %v1646 = vld [vmem:[%s353 + $0xc0] sm:$0xff]
        %v1647 = vld [vmem:[%s353 + $0xc8] sm:$0xff]
        %v1648 = vld [vmem:[%s353 + $0xd0] sm:$0xff]
        %v1649 = vld [vmem:[%s353 + $0xd8] sm:$0xff]
        %v1650 = vld [vmem:[%s353 + $0xe0] sm:$0xff]
        %v1651 = vld [vmem:[%s353 + $0xe8] sm:$0xff]
        %v1652 = vld [vmem:[%s353 + $0xf0] sm:$0xff]
        %v1653 = vld [vmem:[%s353 + $0xf8] sm:$0xff]
        %v1654 = vld [vmem:[%s353 + $0x100] sm:$0xff]
        %v1655 = vld [vmem:[%s353 + $0x108] sm:$0xff]
        %v1656 = vld [vmem:[%s353 + $0x110] sm:$0xff]
        %v1657 = vld [vmem:[%s353 + $0x118] sm:$0xff]
        %v1658 = vld [vmem:[%s353 + $0x120] sm:$0xff]
        %v1659 = vld [vmem:[%s353 + $0x128] sm:$0xff]
        %v1660 = vld [vmem:[%s353 + $0x130] sm:$0xff]
        %v1661 = vld [vmem:[%s353 + $0x138] sm:$0xff]
        %v1662 = vld [vmem:[%s353 + $0x140] sm:$0xff]
        %v1663 = vld [vmem:[%s353 + $0x148] sm:$0xff]
        %v1664 = vld [vmem:[%s353 + $0x150] sm:$0xff]
        %v1665 = vld [vmem:[%s353 + $0x158] sm:$0xff]
        %v1666 = vld [vmem:[%s353 + $0x160] sm:$0xff]
        %v1667 = vld [vmem:[%s353 + $0x168] sm:$0xff]
        %v1668 = vld [vmem:[%s353 + $0x170] sm:$0xff]
        %v1669 = vld [vmem:[%s353 + $0x178] sm:$0xff]
        %v1670 = vld [vmem:[%s353 + $0x180] sm:$0xff]
        %v1671 = vld [vmem:[%s353 + $0x188] sm:$0xff]
        %v1672 = vld [vmem:[%s353 + $0x190] sm:$0xff]
        %v1673 = vld [vmem:[%s353 + $0x198] sm:$0xff]
        %v1674 = vld [vmem:[%s353 + $0x1a0] sm:$0xff]
        %v1675 = vld [vmem:[%s353 + $0x1a8] sm:$0xff]
        %v1676 = vld [vmem:[%s353 + $0x1b0] sm:$0xff]
        %v1677 = vld [vmem:[%s353 + $0x1b8] sm:$0xff]
        %v1678 = vld [vmem:[%s353 + $0x1c0] sm:$0xff]
        %v1679 = vld [vmem:[%s353 + $0x1c8] sm:$0xff]
        %v1680 = vld [vmem:[%s353 + $0x1d0] sm:$0xff]
        %v1681 = vld [vmem:[%s353 + $0x1d8] sm:$0xff]
        %v1682 = vld [vmem:[%s353 + $0x1e0] sm:$0xff]
        %v1683 = vld [vmem:[%s353 + $0x1e8] sm:$0xff]
        %v1684 = vld [vmem:[%s353 + $0x1f0] sm:$0xff]
        %v1685 = vld [vmem:[%s353 + $0x1f8] sm:$0xff]
        %v1686 = vld [vmem:[%s353 + $0x200] sm:$0xff]
        %v1687 = vld [vmem:[%s353 + $0x208] sm:$0xff]
        %v1688 = vld [vmem:[%s353 + $0x210] sm:$0xff]
        %v1689 = vld [vmem:[%s353 + $0x218] sm:$0xff]
        %v1690 = vld [vmem:[%s353 + $0x220] sm:$0xff]
        %v1691 = vld [vmem:[%s353 + $0x228] sm:$0xff]
        %v1692 = vld [vmem:[%s353 + $0x230] sm:$0xff]
        %v1693 = vld [vmem:[%s353 + $0x238] sm:$0xff]
        %v1694 = vld [vmem:[%s353 + $0x240] sm:$0xff]
        %v1695 = vld [vmem:[%s353 + $0x248] sm:$0xff]
        %v1696 = vld [vmem:[%s353 + $0x250] sm:$0xff]
        %v1697 = vld [vmem:[%s353 + $0x258] sm:$0xff]
        %v1698 = vld [vmem:[%s353 + $0x260] sm:$0xff]
        %v1699 = vld [vmem:[%s353 + $0x268] sm:$0xff]
        %v1700 = vld [vmem:[%s353 + $0x270] sm:$0xff]
        %v1701 = vld [vmem:[%s353 + $0x278] sm:$0xff]
        %v1702 = vld [vmem:[%s353 + $0x280] sm:$0xff]
        %v1703 = vld [vmem:[%s353 + $0x288] sm:$0xff]
        %v1704 = vld [vmem:[%s353 + $0x290] sm:$0xff]
        %v1705 = vld [vmem:[%s353 + $0x298] sm:$0xff]
        %v1706 = vld [vmem:[%s353 + $0x2a0] sm:$0xff]
        %v1707 = vld [vmem:[%s353 + $0x2a8] sm:$0xff]
        %v1708 = vld [vmem:[%s353 + $0x2b0] sm:$0xff]
        %v1709 = vld [vmem:[%s353 + $0x2b8] sm:$0xff]
        %v1710 = vld [vmem:[%s353 + $0x2c0] sm:$0xff]
        %v1711 = vld [vmem:[%s353 + $0x2c8] sm:$0xff]
        %v1712 = vld [vmem:[%s353 + $0x2d0] sm:$0xff]
        %v1713 = vld [vmem:[%s353 + $0x2d8] sm:$0xff]
        %v1714 = vld [vmem:[%s353 + $0x2e0] sm:$0xff]
        %v1715 = vld [vmem:[%s353 + $0x2e8] sm:$0xff]
        %v1716 = vld [vmem:[%s353 + $0x2f0] sm:$0xff]
        %v1717 = vld [vmem:[%s353 + $0x2f8] sm:$0xff]
        %v1718 = vld [vmem:[%s353 + $0x300] sm:$0xff]
        %v1719 = vld [vmem:[%s353 + $0x308] sm:$0xff]
        %v1720 = vld [vmem:[%s353 + $0x310] sm:$0xff]
        %v1721 = vld [vmem:[%s353 + $0x318] sm:$0xff]
        %v1722 = vld [vmem:[%s353 + $0x320] sm:$0xff]
        %v1723 = vld [vmem:[%s353 + $0x328] sm:$0xff]
        %v1724 = vld [vmem:[%s353 + $0x330] sm:$0xff]
        %v1725 = vld [vmem:[%s353 + $0x338] sm:$0xff]
        %v1726 = vld [vmem:[%s353 + $0x340] sm:$0xff]
        %v1727 = vld [vmem:[%s353 + $0x348] sm:$0xff]
        %v1728 = vld [vmem:[%s353 + $0x350] sm:$0xff]
        %v1729 = vld [vmem:[%s353 + $0x358] sm:$0xff]
        %v1730 = vld [vmem:[%s353 + $0x360] sm:$0xff]
        %v1731 = vld [vmem:[%s353 + $0x368] sm:$0xff]
        %v1732 = vld [vmem:[%s353 + $0x370] sm:$0xff]
        %v1733 = vld [vmem:[%s353 + $0x378] sm:$0xff]
        %v1734 = vld [vmem:[%s353 + $0x380] sm:$0xff]
        %v1735 = vld [vmem:[%s353 + $0x388] sm:$0xff]
        %v1736 = vld [vmem:[%s353 + $0x390] sm:$0xff]
        %v1737 = vld [vmem:[%s353 + $0x398] sm:$0xff]
        %v1738 = vld [vmem:[%s353 + $0x3a0] sm:$0xff]
        %v1739 = vld [vmem:[%s353 + $0x3a8] sm:$0xff]
        %v1740 = vld [vmem:[%s353 + $0x3b0] sm:$0xff]
        %v1741 = vld [vmem:[%s353 + $0x3b8] sm:$0xff]
        %v1742 = vld [vmem:[%s353 + $0x3c0] sm:$0xff]
        %v1743 = vld [vmem:[%s353 + $0x3c8] sm:$0xff]
        %v1744 = vld [vmem:[%s353 + $0x3d0] sm:$0xff]
        %v1745 = vld [vmem:[%s353 + $0x3d8] sm:$0xff]
        %v1746 = vld [vmem:[%s353 + $0x3e0] sm:$0xff]
        %v1747 = vld [vmem:[%s353 + $0x3e8] sm:$0xff]
        %v1748 = vld [vmem:[%s353 + $0x3f0] sm:$0xff]
        %v1749 = vld [vmem:[%s353 + $0x3f8] sm:$0xff]
        %v1750 = vld [vmem:[%s344] sm:$0xff]
        %v1751 = vld [vmem:[%s344 + $0x8] sm:$0xff]
        %v1752 = vld [vmem:[%s344 + $0x10] sm:$0xff]
        %v1753 = vld [vmem:[%s344 + $0x18] sm:$0xff]
        %v1754 = vld [vmem:[%s344 + $0x20] sm:$0xff]
        %v1755 = vld [vmem:[%s344 + $0x28] sm:$0xff]
        %v1756 = vld [vmem:[%s344 + $0x30] sm:$0xff]
        %v1757 = vld [vmem:[%s344 + $0x38] sm:$0xff]
        %v1758 = vld [vmem:[%s344 + $0x40] sm:$0xff]
        %v1759 = vld [vmem:[%s344 + $0x48] sm:$0xff]
        %v1760 = vld [vmem:[%s344 + $0x50] sm:$0xff]
        %v1761 = vld [vmem:[%s344 + $0x58] sm:$0xff]
        %v1762 = vld [vmem:[%s344 + $0x60] sm:$0xff]
        %v1763 = vld [vmem:[%s344 + $0x68] sm:$0xff]
        %v1764 = vld [vmem:[%s344 + $0x70] sm:$0xff]
        %v1765 = vld [vmem:[%s344 + $0x78] sm:$0xff]
        %v1766 = vld [vmem:[%s344 + $0x80] sm:$0xff]
        %v1767 = vld [vmem:[%s344 + $0x88] sm:$0xff]
        %v1768 = vld [vmem:[%s344 + $0x90] sm:$0xff]
        %v1769 = vld [vmem:[%s344 + $0x98] sm:$0xff]
        %v1770 = vld [vmem:[%s344 + $0xa0] sm:$0xff]
        %v1771 = vld [vmem:[%s344 + $0xa8] sm:$0xff]
        %v1772 = vld [vmem:[%s344 + $0xb0] sm:$0xff]
        %v1773 = vld [vmem:[%s344 + $0xb8] sm:$0xff]
        %v1774 = vld [vmem:[%s344 + $0xc0] sm:$0xff]
        %v1775 = vld [vmem:[%s344 + $0xc8] sm:$0xff]
        %v1776 = vld [vmem:[%s344 + $0xd0] sm:$0xff]
        %v1777 = vld [vmem:[%s344 + $0xd8] sm:$0xff]
        %v1778 = vld [vmem:[%s344 + $0xe0] sm:$0xff]
        %v1779 = vld [vmem:[%s344 + $0xe8] sm:$0xff]
        %v1780 = vld [vmem:[%s344 + $0xf0] sm:$0xff]
        %v1781 = vld [vmem:[%s344 + $0xf8] sm:$0xff]
        %v1782 = vld [vmem:[%s344 + $0x100] sm:$0xff]
        %v1783 = vld [vmem:[%s344 + $0x108] sm:$0xff]
        %v1784 = vld [vmem:[%s344 + $0x110] sm:$0xff]
        %v1785 = vld [vmem:[%s344 + $0x118] sm:$0xff]
        %v1786 = vld [vmem:[%s344 + $0x120] sm:$0xff]
        %v1787 = vld [vmem:[%s344 + $0x128] sm:$0xff]
        %v1788 = vld [vmem:[%s344 + $0x130] sm:$0xff]
        %v1789 = vld [vmem:[%s344 + $0x138] sm:$0xff]
        %v1790 = vld [vmem:[%s344 + $0x140] sm:$0xff]
        %v1791 = vld [vmem:[%s344 + $0x148] sm:$0xff]
        %v1792 = vld [vmem:[%s344 + $0x150] sm:$0xff]
        %v1793 = vld [vmem:[%s344 + $0x158] sm:$0xff]
        %v1794 = vld [vmem:[%s344 + $0x160] sm:$0xff]
        %v1795 = vld [vmem:[%s344 + $0x168] sm:$0xff]
        %v1796 = vld [vmem:[%s344 + $0x170] sm:$0xff]
        %v1797 = vld [vmem:[%s344 + $0x178] sm:$0xff]
        %v1798 = vld [vmem:[%s344 + $0x180] sm:$0xff]
        %v1799 = vld [vmem:[%s344 + $0x188] sm:$0xff]
        %v1800 = vld [vmem:[%s344 + $0x190] sm:$0xff]
        %v1801 = vld [vmem:[%s344 + $0x198] sm:$0xff]
        %v1802 = vld [vmem:[%s344 + $0x1a0] sm:$0xff]
        %v1803 = vld [vmem:[%s344 + $0x1a8] sm:$0xff]
        %v1804 = vld [vmem:[%s344 + $0x1b0] sm:$0xff]
        %v1805 = vld [vmem:[%s344 + $0x1b8] sm:$0xff]
        %v1806 = vld [vmem:[%s344 + $0x1c0] sm:$0xff]
        %v1807 = vld [vmem:[%s344 + $0x1c8] sm:$0xff]
        %v1808 = vld [vmem:[%s344 + $0x1d0] sm:$0xff]
        %v1809 = vld [vmem:[%s344 + $0x1d8] sm:$0xff]
        %v1810 = vld [vmem:[%s344 + $0x1e0] sm:$0xff]
        %v1811 = vld [vmem:[%s344 + $0x1e8] sm:$0xff]
        %v1812 = vld [vmem:[%s344 + $0x1f0] sm:$0xff]
        %v1813 = vld [vmem:[%s344 + $0x1f8] sm:$0xff]
        %v1814 = vld [vmem:[%s344 + $0x200] sm:$0xff]
        %v1815 = vld [vmem:[%s344 + $0x208] sm:$0xff]
        %v1816 = vld [vmem:[%s344 + $0x210] sm:$0xff]
        %v1817 = vld [vmem:[%s344 + $0x218] sm:$0xff]
        %v1818 = vld [vmem:[%s344 + $0x220] sm:$0xff]
        %v1819 = vld [vmem:[%s344 + $0x228] sm:$0xff]
        %v1820 = vld [vmem:[%s344 + $0x230] sm:$0xff]
        %v1821 = vld [vmem:[%s344 + $0x238] sm:$0xff]
        %v1822 = vld [vmem:[%s344 + $0x240] sm:$0xff]
        %v1823 = vld [vmem:[%s344 + $0x248] sm:$0xff]
        %v1824 = vld [vmem:[%s344 + $0x250] sm:$0xff]
        %v1825 = vld [vmem:[%s344 + $0x258] sm:$0xff]
        %v1826 = vld [vmem:[%s344 + $0x260] sm:$0xff]
        %v1827 = vld [vmem:[%s344 + $0x268] sm:$0xff]
        %v1828 = vld [vmem:[%s344 + $0x270] sm:$0xff]
        %v1829 = vld [vmem:[%s344 + $0x278] sm:$0xff]
        %v1830 = vld [vmem:[%s344 + $0x280] sm:$0xff]
        %v1831 = vld [vmem:[%s344 + $0x288] sm:$0xff]
        %v1832 = vld [vmem:[%s344 + $0x290] sm:$0xff]
        %v1833 = vld [vmem:[%s344 + $0x298] sm:$0xff]
        %v1834 = vld [vmem:[%s344 + $0x2a0] sm:$0xff]
        %v1835 = vld [vmem:[%s344 + $0x2a8] sm:$0xff]
        %v1836 = vld [vmem:[%s344 + $0x2b0] sm:$0xff]
        %v1837 = vld [vmem:[%s344 + $0x2b8] sm:$0xff]
        %v1838 = vld [vmem:[%s344 + $0x2c0] sm:$0xff]
        %v1839 = vld [vmem:[%s344 + $0x2c8] sm:$0xff]
        %v1840 = vld [vmem:[%s344 + $0x2d0] sm:$0xff]
        %v1841 = vld [vmem:[%s344 + $0x2d8] sm:$0xff]
        %v1842 = vld [vmem:[%s344 + $0x2e0] sm:$0xff]
        %v1843 = vld [vmem:[%s344 + $0x2e8] sm:$0xff]
        %v1844 = vld [vmem:[%s344 + $0x2f0] sm:$0xff]
        %v1845 = vld [vmem:[%s344 + $0x2f8] sm:$0xff]
        %v1846 = vld [vmem:[%s344 + $0x300] sm:$0xff]
        %v1847 = vld [vmem:[%s344 + $0x308] sm:$0xff]
        %v1848 = vld [vmem:[%s344 + $0x310] sm:$0xff]
        %v1849 = vld [vmem:[%s344 + $0x318] sm:$0xff]
        %v1850 = vld [vmem:[%s344 + $0x320] sm:$0xff]
        %v1851 = vld [vmem:[%s344 + $0x328] sm:$0xff]
        %v1852 = vld [vmem:[%s344 + $0x330] sm:$0xff]
        %v1853 = vld [vmem:[%s344 + $0x338] sm:$0xff]
        %v1854 = vld [vmem:[%s344 + $0x340] sm:$0xff]
        %v1855 = vld [vmem:[%s344 + $0x348] sm:$0xff]
        %v1856 = vld [vmem:[%s344 + $0x350] sm:$0xff]
        %v1857 = vld [vmem:[%s344 + $0x358] sm:$0xff]
        %v1858 = vld [vmem:[%s344 + $0x360] sm:$0xff]
        %v1859 = vld [vmem:[%s344 + $0x368] sm:$0xff]
        %v1860 = vld [vmem:[%s344 + $0x370] sm:$0xff]
        %v1861 = vld [vmem:[%s344 + $0x378] sm:$0xff]
        %v1862 = vld [vmem:[%s344 + $0x380] sm:$0xff]
        %v1863 = vld [vmem:[%s344 + $0x388] sm:$0xff]
        %v1864 = vld [vmem:[%s344 + $0x390] sm:$0xff]
        %v1865 = vld [vmem:[%s344 + $0x398] sm:$0xff]
        %v1866 = vld [vmem:[%s344 + $0x3a0] sm:$0xff]
        %v1867 = vld [vmem:[%s344 + $0x3a8] sm:$0xff]
        %v1868 = vld [vmem:[%s344 + $0x3b0] sm:$0xff]
        %v1869 = vld [vmem:[%s344 + $0x3b8] sm:$0xff]
        %v1870 = vld [vmem:[%s344 + $0x3c0] sm:$0xff]
        %v1871 = vld [vmem:[%s344 + $0x3c8] sm:$0xff]
        %v1872 = vld [vmem:[%s344 + $0x3d0] sm:$0xff]
        %v1873 = vld [vmem:[%s344 + $0x3d8] sm:$0xff]
        %v1874 = vld [vmem:[%s344 + $0x3e0] sm:$0xff]
        %v1875 = vld [vmem:[%s344 + $0x3e8] sm:$0xff]
        %v1876 = vld [vmem:[%s344 + $0x3f0] sm:$0xff]
        %v1877 = vld [vmem:[%s344 + $0x3f8] sm:$0xff]
        %v1878 = vsel %vm1494, %v1622, %v1750
        %v1879 = vsel %vm1495, %v1623, %v1751
        %v1880 = vsel %vm1496, %v1624, %v1752
        %v1881 = vsel %vm1497, %v1625, %v1753
        %v1882 = vsel %vm1498, %v1626, %v1754
        %v1883 = vsel %vm1499, %v1627, %v1755
        %v1884 = vsel %vm1500, %v1628, %v1756
        %v1885 = vsel %vm1501, %v1629, %v1757
        %v1886 = vsel %vm1502, %v1630, %v1758
        %v1887 = vsel %vm1503, %v1631, %v1759
        %v1888 = vsel %vm1504, %v1632, %v1760
        %v1889 = vsel %vm1505, %v1633, %v1761
        %v1890 = vsel %vm1506, %v1634, %v1762
        %v1891 = vsel %vm1507, %v1635, %v1763
        %v1892 = vsel %vm1508, %v1636, %v1764
        %v1893 = vsel %vm1509, %v1637, %v1765
        %v1894 = vsel %vm1510, %v1638, %v1766
        %v1895 = vsel %vm1511, %v1639, %v1767
        %v1896 = vsel %vm1512, %v1640, %v1768
        %v1897 = vsel %vm1513, %v1641, %v1769
        %v1898 = vsel %vm1514, %v1642, %v1770
        %v1899 = vsel %vm1515, %v1643, %v1771
        %v1900 = vsel %vm1516, %v1644, %v1772
        %v1901 = vsel %vm1517, %v1645, %v1773
        %v1902 = vsel %vm1518, %v1646, %v1774
        %v1903 = vsel %vm1519, %v1647, %v1775
        %v1904 = vsel %vm1520, %v1648, %v1776
        %v1905 = vsel %vm1521, %v1649, %v1777
        %v1906 = vsel %vm1522, %v1650, %v1778
        %v1907 = vsel %vm1523, %v1651, %v1779
        %v1908 = vsel %vm1524, %v1652, %v1780
        %v1909 = vsel %vm1525, %v1653, %v1781
        %v1910 = vsel %vm1526, %v1654, %v1782
        %v1911 = vsel %vm1527, %v1655, %v1783
        %v1912 = vsel %vm1528, %v1656, %v1784
        %v1913 = vsel %vm1529, %v1657, %v1785
        %v1914 = vsel %vm1530, %v1658, %v1786
        %v1915 = vsel %vm1531, %v1659, %v1787
        %v1916 = vsel %vm1532, %v1660, %v1788
        %v1917 = vsel %vm1533, %v1661, %v1789
        %v1918 = vsel %vm1534, %v1662, %v1790
        %v1919 = vsel %vm1535, %v1663, %v1791
        %v1920 = vsel %vm1536, %v1664, %v1792
        %v1921 = vsel %vm1537, %v1665, %v1793
        %v1922 = vsel %vm1538, %v1666, %v1794
        %v1923 = vsel %vm1539, %v1667, %v1795
        %v1924 = vsel %vm1540, %v1668, %v1796
        %v1925 = vsel %vm1541, %v1669, %v1797
        %v1926 = vsel %vm1542, %v1670, %v1798
        %v1927 = vsel %vm1543, %v1671, %v1799
        %v1928 = vsel %vm1544, %v1672, %v1800
        %v1929 = vsel %vm1545, %v1673, %v1801
        %v1930 = vsel %vm1546, %v1674, %v1802
        %v1931 = vsel %vm1547, %v1675, %v1803
        %v1932 = vsel %vm1548, %v1676, %v1804
        %v1933 = vsel %vm1549, %v1677, %v1805
        %v1934 = vsel %vm1550, %v1678, %v1806
        %v1935 = vsel %vm1551, %v1679, %v1807
        %v1936 = vsel %vm1552, %v1680, %v1808
        %v1937 = vsel %vm1553, %v1681, %v1809
        %v1938 = vsel %vm1554, %v1682, %v1810
        %v1939 = vsel %vm1555, %v1683, %v1811
        %v1940 = vsel %vm1556, %v1684, %v1812
        %v1941 = vsel %vm1557, %v1685, %v1813
        %v1942 = vsel %vm1558, %v1686, %v1814
        %v1943 = vsel %vm1559, %v1687, %v1815
        %v1944 = vsel %vm1560, %v1688, %v1816
        %v1945 = vsel %vm1561, %v1689, %v1817
        %v1946 = vsel %vm1562, %v1690, %v1818
        %v1947 = vsel %vm1563, %v1691, %v1819
        %v1948 = vsel %vm1564, %v1692, %v1820
        %v1949 = vsel %vm1565, %v1693, %v1821
        %v1950 = vsel %vm1566, %v1694, %v1822
        %v1951 = vsel %vm1567, %v1695, %v1823
        %v1952 = vsel %vm1568, %v1696, %v1824
        %v1953 = vsel %vm1569, %v1697, %v1825
        %v1954 = vsel %vm1570, %v1698, %v1826
        %v1955 = vsel %vm1571, %v1699, %v1827
        %v1956 = vsel %vm1572, %v1700, %v1828
        %v1957 = vsel %vm1573, %v1701, %v1829
        %v1958 = vsel %vm1574, %v1702, %v1830
        %v1959 = vsel %vm1575, %v1703, %v1831
        %v1960 = vsel %vm1576, %v1704, %v1832
        %v1961 = vsel %vm1577, %v1705, %v1833
        %v1962 = vsel %vm1578, %v1706, %v1834
        %v1963 = vsel %vm1579, %v1707, %v1835
        %v1964 = vsel %vm1580, %v1708, %v1836
        %v1965 = vsel %vm1581, %v1709, %v1837
        %v1966 = vsel %vm1582, %v1710, %v1838
        %v1967 = vsel %vm1583, %v1711, %v1839
        %v1968 = vsel %vm1584, %v1712, %v1840
        %v1969 = vsel %vm1585, %v1713, %v1841
        %v1970 = vsel %vm1586, %v1714, %v1842
        %v1971 = vsel %vm1587, %v1715, %v1843
        %v1972 = vsel %vm1588, %v1716, %v1844
        %v1973 = vsel %vm1589, %v1717, %v1845
        %v1974 = vsel %vm1590, %v1718, %v1846
        %v1975 = vsel %vm1591, %v1719, %v1847
        %v1976 = vsel %vm1592, %v1720, %v1848
        %v1977 = vsel %vm1593, %v1721, %v1849
        %v1978 = vsel %vm1594, %v1722, %v1850
        %v1979 = vsel %vm1595, %v1723, %v1851
        %v1980 = vsel %vm1596, %v1724, %v1852
        %v1981 = vsel %vm1597, %v1725, %v1853
        %v1982 = vsel %vm1598, %v1726, %v1854
        %v1983 = vsel %vm1599, %v1727, %v1855
        %v1984 = vsel %vm1600, %v1728, %v1856
        %v1985 = vsel %vm1601, %v1729, %v1857
        %v1986 = vsel %vm1602, %v1730, %v1858
        %v1987 = vsel %vm1603, %v1731, %v1859
        %v1988 = vsel %vm1604, %v1732, %v1860
        %v1989 = vsel %vm1605, %v1733, %v1861
        %v1990 = vsel %vm1606, %v1734, %v1862
        %v1991 = vsel %vm1607, %v1735, %v1863
        %v1992 = vsel %vm1608, %v1736, %v1864
        %v1993 = vsel %vm1609, %v1737, %v1865
        %v1994 = vsel %vm1610, %v1738, %v1866
        %v1995 = vsel %vm1611, %v1739, %v1867
        %v1996 = vsel %vm1612, %v1740, %v1868
        %v1997 = vsel %vm1613, %v1741, %v1869
        %v1998 = vsel %vm1614, %v1742, %v1870
        %v1999 = vsel %vm1615, %v1743, %v1871
        %v2000 = vsel %vm1616, %v1744, %v1872
        %v2001 = vsel %vm1617, %v1745, %v1873
        %v2002 = vsel %vm1618, %v1746, %v1874
        %v2003 = vsel %vm1619, %v1747, %v1875
        %v2004 = vsel %vm1620, %v1748, %v1876
        %v2005 = vsel %vm1621, %v1749, %v1877
        %2006 = vst [vmem:[%s397] sm:$0xff] %v1878
        %2007 = vst [vmem:[%s397 + $0x8] sm:$0xff] %v1879
        %2008 = vst [vmem:[%s397 + $0x10] sm:$0xff] %v1880
        %2009 = vst [vmem:[%s397 + $0x18] sm:$0xff] %v1881
        %2010 = vst [vmem:[%s397 + $0x20] sm:$0xff] %v1882
        %2011 = vst [vmem:[%s397 + $0x28] sm:$0xff] %v1883
        %2012 = vst [vmem:[%s397 + $0x30] sm:$0xff] %v1884
        %2013 = vst [vmem:[%s397 + $0x38] sm:$0xff] %v1885
        %2014 = vst [vmem:[%s397 + $0x40] sm:$0xff] %v1886
        %2015 = vst [vmem:[%s397 + $0x48] sm:$0xff] %v1887
        %2016 = vst [vmem:[%s397 + $0x50] sm:$0xff] %v1888
        %2017 = vst [vmem:[%s397 + $0x58] sm:$0xff] %v1889
        %2018 = vst [vmem:[%s397 + $0x60] sm:$0xff] %v1890
        %2019 = vst [vmem:[%s397 + $0x68] sm:$0xff] %v1891
        %2020 = vst [vmem:[%s397 + $0x70] sm:$0xff] %v1892
        %2021 = vst [vmem:[%s397 + $0x78] sm:$0xff] %v1893
        %2022 = vst [vmem:[%s397 + $0x80] sm:$0xff] %v1894
        %2023 = vst [vmem:[%s397 + $0x88] sm:$0xff] %v1895
        %2024 = vst [vmem:[%s397 + $0x90] sm:$0xff] %v1896
        %2025 = vst [vmem:[%s397 + $0x98] sm:$0xff] %v1897
        %2026 = vst [vmem:[%s397 + $0xa0] sm:$0xff] %v1898
        %2027 = vst [vmem:[%s397 + $0xa8] sm:$0xff] %v1899
        %2028 = vst [vmem:[%s397 + $0xb0] sm:$0xff] %v1900
        %2029 = vst [vmem:[%s397 + $0xb8] sm:$0xff] %v1901
        %2030 = vst [vmem:[%s397 + $0xc0] sm:$0xff] %v1902
        %2031 = vst [vmem:[%s397 + $0xc8] sm:$0xff] %v1903
        %2032 = vst [vmem:[%s397 + $0xd0] sm:$0xff] %v1904
        %2033 = vst [vmem:[%s397 + $0xd8] sm:$0xff] %v1905
        %2034 = vst [vmem:[%s397 + $0xe0] sm:$0xff] %v1906
        %2035 = vst [vmem:[%s397 + $0xe8] sm:$0xff] %v1907
        %2036 = vst [vmem:[%s397 + $0xf0] sm:$0xff] %v1908
        %2037 = vst [vmem:[%s397 + $0xf8] sm:$0xff] %v1909
        %2038 = vst [vmem:[%s397 + $0x100] sm:$0xff] %v1910
        %2039 = vst [vmem:[%s397 + $0x108] sm:$0xff] %v1911
        %2040 = vst [vmem:[%s397 + $0x110] sm:$0xff] %v1912
        %2041 = vst [vmem:[%s397 + $0x118] sm:$0xff] %v1913
        %2042 = vst [vmem:[%s397 + $0x120] sm:$0xff] %v1914
        %2043 = vst [vmem:[%s397 + $0x128] sm:$0xff] %v1915
        %2044 = vst [vmem:[%s397 + $0x130] sm:$0xff] %v1916
        %2045 = vst [vmem:[%s397 + $0x138] sm:$0xff] %v1917
        %2046 = vst [vmem:[%s397 + $0x140] sm:$0xff] %v1918
        %2047 = vst [vmem:[%s397 + $0x148] sm:$0xff] %v1919
        %2048 = vst [vmem:[%s397 + $0x150] sm:$0xff] %v1920
        %2049 = vst [vmem:[%s397 + $0x158] sm:$0xff] %v1921
        %2050 = vst [vmem:[%s397 + $0x160] sm:$0xff] %v1922
        %2051 = vst [vmem:[%s397 + $0x168] sm:$0xff] %v1923
        %2052 = vst [vmem:[%s397 + $0x170] sm:$0xff] %v1924
        %2053 = vst [vmem:[%s397 + $0x178] sm:$0xff] %v1925
        %2054 = vst [vmem:[%s397 + $0x180] sm:$0xff] %v1926
        %2055 = vst [vmem:[%s397 + $0x188] sm:$0xff] %v1927
        %2056 = vst [vmem:[%s397 + $0x190] sm:$0xff] %v1928
        %2057 = vst [vmem:[%s397 + $0x198] sm:$0xff] %v1929
        %2058 = vst [vmem:[%s397 + $0x1a0] sm:$0xff] %v1930
        %2059 = vst [vmem:[%s397 + $0x1a8] sm:$0xff] %v1931
        %2060 = vst [vmem:[%s397 + $0x1b0] sm:$0xff] %v1932
        %2061 = vst [vmem:[%s397 + $0x1b8] sm:$0xff] %v1933
        %2062 = vst [vmem:[%s397 + $0x1c0] sm:$0xff] %v1934
        %2063 = vst [vmem:[%s397 + $0x1c8] sm:$0xff] %v1935
        %2064 = vst [vmem:[%s397 + $0x1d0] sm:$0xff] %v1936
        %2065 = vst [vmem:[%s397 + $0x1d8] sm:$0xff] %v1937
        %2066 = vst [vmem:[%s397 + $0x1e0] sm:$0xff] %v1938
        %2067 = vst [vmem:[%s397 + $0x1e8] sm:$0xff] %v1939
        %2068 = vst [vmem:[%s397 + $0x1f0] sm:$0xff] %v1940
        %2069 = vst [vmem:[%s397 + $0x1f8] sm:$0xff] %v1941
        %2070 = vst [vmem:[%s397 + $0x200] sm:$0xff] %v1942
        %2071 = vst [vmem:[%s397 + $0x208] sm:$0xff] %v1943
        %2072 = vst [vmem:[%s397 + $0x210] sm:$0xff] %v1944
        %2073 = vst [vmem:[%s397 + $0x218] sm:$0xff] %v1945
        %2074 = vst [vmem:[%s397 + $0x220] sm:$0xff] %v1946
        %2075 = vst [vmem:[%s397 + $0x228] sm:$0xff] %v1947
        %2076 = vst [vmem:[%s397 + $0x230] sm:$0xff] %v1948
        %2077 = vst [vmem:[%s397 + $0x238] sm:$0xff] %v1949
        %2078 = vst [vmem:[%s397 + $0x240] sm:$0xff] %v1950
        %2079 = vst [vmem:[%s397 + $0x248] sm:$0xff] %v1951
        %2080 = vst [vmem:[%s397 + $0x250] sm:$0xff] %v1952
        %2081 = vst [vmem:[%s397 + $0x258] sm:$0xff] %v1953
        %2082 = vst [vmem:[%s397 + $0x260] sm:$0xff] %v1954
        %2083 = vst [vmem:[%s397 + $0x268] sm:$0xff] %v1955
        %2084 = vst [vmem:[%s397 + $0x270] sm:$0xff] %v1956
        %2085 = vst [vmem:[%s397 + $0x278] sm:$0xff] %v1957
        %2086 = vst [vmem:[%s397 + $0x280] sm:$0xff] %v1958
        %2087 = vst [vmem:[%s397 + $0x288] sm:$0xff] %v1959
        %2088 = vst [vmem:[%s397 + $0x290] sm:$0xff] %v1960
        %2089 = vst [vmem:[%s397 + $0x298] sm:$0xff] %v1961
        %2090 = vst [vmem:[%s397 + $0x2a0] sm:$0xff] %v1962
        %2091 = vst [vmem:[%s397 + $0x2a8] sm:$0xff] %v1963
        %2092 = vst [vmem:[%s397 + $0x2b0] sm:$0xff] %v1964
        %2093 = vst [vmem:[%s397 + $0x2b8] sm:$0xff] %v1965
        %2094 = vst [vmem:[%s397 + $0x2c0] sm:$0xff] %v1966
        %2095 = vst [vmem:[%s397 + $0x2c8] sm:$0xff] %v1967
        %2096 = vst [vmem:[%s397 + $0x2d0] sm:$0xff] %v1968
        %2097 = vst [vmem:[%s397 + $0x2d8] sm:$0xff] %v1969
        %2098 = vst [vmem:[%s397 + $0x2e0] sm:$0xff] %v1970
        %2099 = vst [vmem:[%s397 + $0x2e8] sm:$0xff] %v1971
        %2100 = vst [vmem:[%s397 + $0x2f0] sm:$0xff] %v1972
        %2101 = vst [vmem:[%s397 + $0x2f8] sm:$0xff] %v1973
        %2102 = vst [vmem:[%s397 + $0x300] sm:$0xff] %v1974
        %2103 = vst [vmem:[%s397 + $0x308] sm:$0xff] %v1975
        %2104 = vst [vmem:[%s397 + $0x310] sm:$0xff] %v1976
        %2105 = vst [vmem:[%s397 + $0x318] sm:$0xff] %v1977
        %2106 = vst [vmem:[%s397 + $0x320] sm:$0xff] %v1978
        %2107 = vst [vmem:[%s397 + $0x328] sm:$0xff] %v1979
        %2108 = vst [vmem:[%s397 + $0x330] sm:$0xff] %v1980
        %2109 = vst [vmem:[%s397 + $0x338] sm:$0xff] %v1981
        %2110 = vst [vmem:[%s397 + $0x340] sm:$0xff] %v1982
        %2111 = vst [vmem:[%s397 + $0x348] sm:$0xff] %v1983
        %2112 = vst [vmem:[%s397 + $0x350] sm:$0xff] %v1984
        %2113 = vst [vmem:[%s397 + $0x358] sm:$0xff] %v1985
        %2114 = vst [vmem:[%s397 + $0x360] sm:$0xff] %v1986
        %2115 = vst [vmem:[%s397 + $0x368] sm:$0xff] %v1987
        %2116 = vst [vmem:[%s397 + $0x370] sm:$0xff] %v1988
        %2117 = vst [vmem:[%s397 + $0x378] sm:$0xff] %v1989
        %2118 = vst [vmem:[%s397 + $0x380] sm:$0xff] %v1990
        %2119 = vst [vmem:[%s397 + $0x388] sm:$0xff] %v1991
        %2120 = vst [vmem:[%s397 + $0x390] sm:$0xff] %v1992
        %2121 = vst [vmem:[%s397 + $0x398] sm:$0xff] %v1993
        %2122 = vst [vmem:[%s397 + $0x3a0] sm:$0xff] %v1994
        %2123 = vst [vmem:[%s397 + $0x3a8] sm:$0xff] %v1995
        %2124 = vst [vmem:[%s397 + $0x3b0] sm:$0xff] %v1996
        %2125 = vst [vmem:[%s397 + $0x3b8] sm:$0xff] %v1997
        %2126 = vst [vmem:[%s397 + $0x3c0] sm:$0xff] %v1998
        %2127 = vst [vmem:[%s397 + $0x3c8] sm:$0xff] %v1999
        %2128 = vst [vmem:[%s397 + $0x3d0] sm:$0xff] %v2000
        %2129 = vst [vmem:[%s397 + $0x3d8] sm:$0xff] %v2001
        %2130 = vst [vmem:[%s397 + $0x3e0] sm:$0xff] %v2002
        %2131 = vst [vmem:[%s397 + $0x3e8] sm:$0xff] %v2003
        %2132 = vst [vmem:[%s397 + $0x3f0] sm:$0xff] %v2004
        %2133 = vst [vmem:[%s397 + $0x3f8] sm:$0xff] %v2005
        %p2134 = scmp.eq.s32.totalorder %s36, 0
        // Predicated region
        $region57: #{tpu_custom_call.1} parent=43 // pred_check
          %p2135 = pneg %p2134
        $region58: #{tpu_custom_call.1} parent=43 // pred_check_branch
          %2137 = sbr.rel (%p2135) target = $region60
        $region59: #{tpu_custom_call.1} parent=43 // pred_region
          %2138 = vst [vmem:[#allocation2] sm:$0xff] 0.0
          %2139 = vst [vmem:[#allocation2 + $0x8] sm:$0xff] 0.0
        $region60: #{tpu_custom_call.1} parent=43 // pred_fallthru
          _
        %s2140 = sshra.s32 %s483, 7
        %s2141 = sand.u32 %s483, 127
        %s2142 = smul.addr %s2140, 8
        %s2143 = scalar_lea.vmem [#allocation5], %s2142
        %v2144 = vld [vmem:[%s2143] sm:$0xff]
        %v2145 = vld [vmem:[%s2143 + $0x8] sm:$0xff]
        %v2146 = vld [vmem:[%s2143 + $0x10] sm:$0xff]
        %v2147 = vld [vmem:[%s2143 + $0x18] sm:$0xff]
        %v2148 = vld [vmem:[#allocation2] sm:$0xff]
        %v2149 = vld [vmem:[#allocation2 + $0x8] sm:$0xff]
        %2150 = vmatprep.subr.mxu0 %v1879
        %2151 = vmatpush1.xpose.msra.mxu0 %v1878
        %2152 = vmatprep.subr.mxu0 %v1883
        %2153 = vmatpush1.xpose.msra.mxu0 %v1882
        %2154 = vmatprep.subr.mxu0 %v1887
        %2155 = vmatpush1.xpose.msra.mxu0 %v1886
        %2156 = vmatprep.subr.mxu0 %v1891
        %2157 = vmatpush1.xpose.msra.mxu0 %v1890
        %2158 = vmatprep.subr.mxu0 %v1895
        %2159 = vmatpush1.xpose.msra.mxu0 %v1894
        %2160 = vmatprep.subr.mxu0 %v1899
        %2161 = vmatpush1.xpose.msra.mxu0 %v1898
        %2162 = vmatprep.subr.mxu0 %v1903
        %2163 = vmatpush1.xpose.msra.mxu0 %v1902
        %2164 = vmatprep.subr.mxu0 %v1907
        %2165 = vmatpush1.xpose.msra.mxu0 %v1906
        %2166 = vmatprep.subr.mxu0 %v1911
        %2167 = vmatpush1.xpose.msra.mxu0 %v1910
        %2168 = vmatprep.subr.mxu0 %v1915
        %2169 = vmatpush1.xpose.msra.mxu0 %v1914
        %2170 = vmatprep.subr.mxu0 %v1919
        %2171 = vmatpush1.xpose.msra.mxu0 %v1918
        %2172 = vmatprep.subr.mxu0 %v1923
        %2173 = vmatpush1.xpose.msra.mxu0 %v1922
        %2174 = vmatprep.subr.mxu0 %v1927
        %2175 = vmatpush1.xpose.msra.mxu0 %v1926
        %2176 = vmatprep.subr.mxu0 %v1931
        %2177 = vmatpush1.xpose.msra.mxu0 %v1930
        %2178 = vmatprep.subr.mxu0 %v1935
        %2179 = vmatpush1.xpose.msra.mxu0 %v1934
        %2180 = vmatprep.subr.mxu0 %v1939
        %2181 = vmatpush1.xpose.msra.mxu0 %v1938
        %2182 = vmatprep.subr.mxu0 %v1943
        %2183 = vmatpush1.xpose.msra.mxu0 %v1942
        %2184 = vmatprep.subr.mxu0 %v1947
        %2185 = vmatpush1.xpose.msra.mxu0 %v1946
        %2186 = vmatprep.subr.mxu0 %v1951
        %2187 = vmatpush1.xpose.msra.mxu0 %v1950
        %2188 = vmatprep.subr.mxu0 %v1955
        %2189 = vmatpush1.xpose.msra.mxu0 %v1954
        %2190 = vmatprep.subr.mxu0 %v1959
        %2191 = vmatpush1.xpose.msra.mxu0 %v1958
        %2192 = vmatprep.subr.mxu0 %v1963
        %2193 = vmatpush1.xpose.msra.mxu0 %v1962
        %2194 = vmatprep.subr.mxu0 %v1967
        %2195 = vmatpush1.xpose.msra.mxu0 %v1966
        %2196 = vmatprep.subr.mxu0 %v1971
        %2197 = vmatpush1.xpose.msra.mxu0 %v1970
        %2198 = vmatprep.subr.mxu0 %v1975
        %2199 = vmatpush1.xpose.msra.mxu0 %v1974
        %2200 = vmatprep.subr.mxu0 %v1979
        %2201 = vmatpush1.xpose.msra.mxu0 %v1978
        %2202 = vmatprep.subr.mxu0 %v1983
        %2203 = vmatpush1.xpose.msra.mxu0 %v1982
        %2204 = vmatprep.subr.mxu0 %v1987
        %2205 = vmatpush1.xpose.msra.mxu0 %v1986
        %2206 = vmatprep.subr.mxu0 %v1991
        %2207 = vmatpush1.xpose.msra.mxu0 %v1990
        %2208 = vmatprep.subr.mxu0 %v1995
        %2209 = vmatpush1.xpose.msra.mxu0 %v1994
        %2210 = vmatprep.subr.mxu0 %v1999
        %2211 = vmatpush1.xpose.msra.mxu0 %v1998
        %2212 = vmatprep.subr.mxu0 %v2003
        %2213 = vmatpush1.xpose.msra.mxu0 %v2002
        %2214 = vmatprep.mubr.f32.mxu0 %v2145
        %2215 = vmatmul.mubr.f32.gmra.mrb[0].mxu0 %v2144
        %v2216 = vpop.f32.mrb[0].mxu0
        %v2217 = vadd.f32 0.0, %v2216
        %v2218 = vpop.f32.mrb[0].mxu0
        %v2219 = vadd.f32 0.0, %v2218
        %2220 = vdwg.mxu0
        %2221 = vmatprep.subr.mxu0 %v1881
        %2222 = vmatpush1.xpose.msra.mxu0 %v1880
        %2223 = vmatprep.subr.mxu0 %v1885
        %2224 = vmatpush1.xpose.msra.mxu0 %v1884
        %2225 = vmatprep.subr.mxu0 %v1889
        %2226 = vmatpush1.xpose.msra.mxu0 %v1888
        %2227 = vmatprep.subr.mxu0 %v1893
        %2228 = vmatpush1.xpose.msra.mxu0 %v1892
        %2229 = vmatprep.subr.mxu0 %v1897
        %2230 = vmatpush1.xpose.msra.mxu0 %v1896
        %2231 = vmatprep.subr.mxu0 %v1901
        %2232 = vmatpush1.xpose.msra.mxu0 %v1900
        %2233 = vmatprep.subr.mxu0 %v1905
        %2234 = vmatpush1.xpose.msra.mxu0 %v1904
        %2235 = vmatprep.subr.mxu0 %v1909
        %2236 = vmatpush1.xpose.msra.mxu0 %v1908
        %2237 = vmatprep.subr.mxu0 %v1913
        %2238 = vmatpush1.xpose.msra.mxu0 %v1912
        %2239 = vmatprep.subr.mxu0 %v1917
        %2240 = vmatpush1.xpose.msra.mxu0 %v1916
        %2241 = vmatprep.subr.mxu0 %v1921
        %2242 = vmatpush1.xpose.msra.mxu0 %v1920
        %2243 = vmatprep.subr.mxu0 %v1925
        %2244 = vmatpush1.xpose.msra.mxu0 %v1924
        %2245 = vmatprep.subr.mxu0 %v1929
        %2246 = vmatpush1.xpose.msra.mxu0 %v1928
        %2247 = vmatprep.subr.mxu0 %v1933
        %2248 = vmatpush1.xpose.msra.mxu0 %v1932
        %2249 = vmatprep.subr.mxu0 %v1937
        %2250 = vmatpush1.xpose.msra.mxu0 %v1936
        %2251 = vmatprep.subr.mxu0 %v1941
        %2252 = vmatpush1.xpose.msra.mxu0 %v1940
        %2253 = vmatprep.subr.mxu0 %v1945
        %2254 = vmatpush1.xpose.msra.mxu0 %v1944
        %2255 = vmatprep.subr.mxu0 %v1949
        %2256 = vmatpush1.xpose.msra.mxu0 %v1948
        %2257 = vmatprep.subr.mxu0 %v1953
        %2258 = vmatpush1.xpose.msra.mxu0 %v1952
        %2259 = vmatprep.subr.mxu0 %v1957
        %2260 = vmatpush1.xpose.msra.mxu0 %v1956
        %2261 = vmatprep.subr.mxu0 %v1961
        %2262 = vmatpush1.xpose.msra.mxu0 %v1960
        %2263 = vmatprep.subr.mxu0 %v1965
        %2264 = vmatpush1.xpose.msra.mxu0 %v1964
        %2265 = vmatprep.subr.mxu0 %v1969
        %2266 = vmatpush1.xpose.msra.mxu0 %v1968
        %2267 = vmatprep.subr.mxu0 %v1973
        %2268 = vmatpush1.xpose.msra.mxu0 %v1972
        %2269 = vmatprep.subr.mxu0 %v1977
        %2270 = vmatpush1.xpose.msra.mxu0 %v1976
        %2271 = vmatprep.subr.mxu0 %v1981
        %2272 = vmatpush1.xpose.msra.mxu0 %v1980
        %2273 = vmatprep.subr.mxu0 %v1985
        %2274 = vmatpush1.xpose.msra.mxu0 %v1984
        %2275 = vmatprep.subr.mxu0 %v1989
        %2276 = vmatpush1.xpose.msra.mxu0 %v1988
        %2277 = vmatprep.subr.mxu0 %v1993
        %2278 = vmatpush1.xpose.msra.mxu0 %v1992
        %2279 = vmatprep.subr.mxu0 %v1997
        %2280 = vmatpush1.xpose.msra.mxu0 %v1996
        %2281 = vmatprep.subr.mxu0 %v2001
        %2282 = vmatpush1.xpose.msra.mxu0 %v2000
        %2283 = vmatprep.subr.mxu0 %v2005
        %2284 = vmatpush1.xpose.msra.mxu0 %v2004
        %2285 = vmatprep.mubr.f32.mxu0 %v2147
        %2286 = vmatmul.mubr.f32.gmra.mrb[0].mxu0 %v2146
        %v2287 = vpop.f32.mrb[0].mxu0
        %v2288 = vadd.f32 %v2217, %v2287
        %v2289 = vpop.f32.mrb[0].mxu0
        %v2290 = vadd.f32 %v2219, %v2289
        %2291 = vdwg.mxu0
        %v2292 = vadd.f32 %v2148, %v2288
        %v2293 = vadd.f32 %v2149, %v2290
        %2294 = vst [vmem:[#allocation2] sm:$0xff] %v2292
        %2295 = vst [vmem:[#allocation2 + $0x8] sm:$0xff] %v2293
        // Predicated region
        $region61: #{tpu_custom_call.1} parent=43 // pred_check
          %p2296 = pneg %p2134
        $region62: #{tpu_custom_call.1} parent=43 // pred_check_branch
          %2298 = sbr.rel (%p2296) target = $region64
        $region63: #{tpu_custom_call.1} parent=43 // pred_region
          %v2299 = vld [vmem:[#allocation2] sm:$0xff]
          %v2300 = vld [vmem:[#allocation2 + $0x8] sm:$0xff]
          %v2301 = vld [vmem:[%s405] sm:$0x3]
          %v2303 = vlaneseq
          %v2304 = vshrl.u32 %v2303, 7
          %v2305 = vsub.s32 0, %v2304
          %v2306 = vrot.slane %v2301, %v2305
          %v2307 = vlaneseq
          %v2308 = vshrl.u32 %v2307, 7
          %v2309 = vsub.s32 1, %v2308
          %v2310 = vrot.slane %v2301, %v2309
          %v2313 = vadd.f32 %v2299, %v2306
          %v2314 = vadd.f32 %v2300, %v2310
          %2315 = vst [vmem:[%s390] sm:$0xff] %v2313
          %2316 = vst [vmem:[%s390 + $0x8] sm:$0xff] %v2314
        $region64: #{tpu_custom_call.1} parent=43 // pred_fallthru
          _
        %s2317 = sand.u32 %s196, 1
        %s2318 = scalar_lea.sflag [#allocation7], %s2317
        %s2319 = sand.u32 %s196, 1
        %s2320 = smul.addr %s2319, 16
        %s2321 = scalar_lea.vmem [#allocation11], %s2320
        %s2322 = sand.u32 %s224, 1
        %s2323 = scalar_lea.sflag [#allocation13], %s2322
        %s2324 = sand.u32 %s224, 1
        %s2325 = smul.addr %s2324, 1024
        %s2326 = scalar_lea.vmem [#allocation12], %s2325
        // Predicated region
        $region65: #{tpu_custom_call.1} parent=43 // pred_check
          %p2327 = pneg %p206
        $region66: #{tpu_custom_call.1} parent=43 // pred_check_branch
          %2329 = sbr.rel (%p2327) target = $region68
        $region67: #{tpu_custom_call.1} parent=43 // pred_region
          %s2330 = smul.u32 2, %s35
          %s2332 = ssub.s32 256, 256
          %2333 = vsyncadd %s2318, %s2332
          %s2334 = smul.addr %s2330, 128
          %s2335 = scalar_lea.hbm %s6, %s2334
          %s2337 = sshll.u32 %s2321, 4
          %s2338 = int_to_ptr.vmem [resolvable:$true] %s2337
          %2340 = dma.vmem_to_hbm [thread:$0]  %s2338, 256, %s2335, %s2318
        $region68: #{tpu_custom_call.1} parent=43 // pred_fallthru
          _
        // Predicated region
        $region69: #{tpu_custom_call.1} parent=43 // pred_check
          %p2341 = pneg %p234
        $region70: #{tpu_custom_call.1} parent=43 // pred_check_branch
          %2343 = sbr.rel (%p2341) target = $region72
        $region71: #{tpu_custom_call.1} parent=43 // pred_region
          %s2344 = smul.u32 32, %s35
          %s2345 = smul.u32 4, %s36
          %s2347 = ssub.s32 16384, 16384
          %2348 = vsyncadd %s2323, %s2347
          %s2349 = smul.addr %s2344, 4
          %s2350 = sadd.s32 %s2345, %s2349
          %s2351 = smul.addr %s2350, 128
          %s2352 = scalar_lea.hbm %s7, %s2351
          %s2353 = sshll.u32 %s2326, 4
          %s2354 = int_to_ptr.vmem [resolvable:$true] %s2353
          %2359 = dma.vmem_to_hbm [thread:$0]  %s2354, 16384, %s2352, %s2323, 512, 512, 32
        $region72: #{tpu_custom_call.1} parent=43 // pred_fallthru
          _
      $region44: #{tpu_custom_call.1} parent=5 // pred_fallthru
        _
      %p2360 = scmp.le.s32.totalorder 2, %s26
      // Predicated region
      $region73: #{tpu_custom_call.1} parent=5 // pred_check
        %p2361 = pneg %p2360
      $region74: #{tpu_custom_call.1} parent=5 // pred_check_branch
        %2363 = sbr.rel (%p2361) target = $region76
      $region75: #{tpu_custom_call.1} parent=5 // pred_region
        %s2364 = ssub.s32 %s26, 2
        // Predicated region
        $region77: #{tpu_custom_call.1} parent=75 // pred_check
          %p2365 = pneg %p212
        $region78: #{tpu_custom_call.1} parent=75 // pred_check_branch
          %2367 = sbr.rel (%p2365) target = $region80
        $region79: #{tpu_custom_call.1} parent=75 // pred_region
          %s2368 = sand.u32 %s197, 1
          %s2369 = scalar_lea.sflag [#allocation7], %s2368
          %s2370 = sand.u32 %s197, 1
          %s2371 = smul.addr %s2370, 16
          %s2372 = scalar_lea.vmem [#allocation11], %s2371
          %2373 = dma.done %s2369, 256
        $region80: #{tpu_custom_call.1} parent=75 // pred_fallthru
          _
        // Predicated region
        $region81: #{tpu_custom_call.1} parent=75 // pred_check
          %p2374 = pneg %p240
        $region82: #{tpu_custom_call.1} parent=75 // pred_check_branch
          %2376 = sbr.rel (%p2374) target = $region84
        $region83: #{tpu_custom_call.1} parent=75 // pred_region
          %s2377 = sand.u32 %s225, 1
          %s2378 = scalar_lea.sflag [#allocation13], %s2377
          %s2379 = sand.u32 %s225, 1
          %s2380 = smul.addr %s2379, 1024
          %s2381 = scalar_lea.vmem [#allocation12], %s2380
          %2382 = dma.done %s2378, 16384
        $region84: #{tpu_custom_call.1} parent=75 // pred_fallthru
          _
      $region76: #{tpu_custom_call.1} parent=5 // pred_fallthru
        _
    $region6: #{tpu_custom_call.1} parent=1 // loop_footer
      %s30 = sadd.s32 1, %s26
    $region7: #{tpu_custom_call.1} parent=1 // loop_footer_branch
      %25 = sbr.rel target = $region3
    $region8: #{tpu_custom_call.1} parent=1 // loop_exit
      _
    %2383 = vsyncpa [#allocation6], 1
    %s2384 = scalar_lea.sflag [#allocation6], 1
    %2385 = vsyncpa %s2384, 1
    %2386 = vsyncpa [#allocation9], 1
    %s2387 = scalar_lea.sflag [#allocation9], 1
    %2388 = vsyncpa %s2387, 1
    %2389 = vsyncpa [#allocation7], 1
    %s2390 = scalar_lea.sflag [#allocation7], 1
    %2391 = vsyncpa %s2390, 1
    %2392 = vsyncpa [#allocation13], 1
    %s2393 = scalar_lea.sflag [#allocation13], 1
    %2394 = vsyncpa %s2393, 1

</llo_original>
